<compile_context>
chip_gen: v5e
topology: v5e:2x2
jax: 0.10.0
libtpu: 0.0.40
codegen_flags: <defaults>
</compile_context>

<pallas_src>
import jax
import jax.numpy as jnp
from jax import lax
from jax.experimental import pallas as pl
from jax.experimental.pallas import tpu as pltpu

N_V = 200                             # number of graph nodes (n_V in the reference module)
F0, F1, F2, F3 = 200, 100, 50, 20     # feature widths 200-100-50-20
F_PAD = 128                           # lane-dense padded feature width


def _normalized_adjacency(a_ref):
    """S = D^{-1/2} (A + I) D^{-1/2} with D = diag((A + I).sum(dim=0))."""
    n = a_ref.shape[0]
    rows = lax.broadcasted_iota(jnp.int32, (n, n), 0)
    cols = lax.broadcasted_iota(jnp.int32, (n, n), 1)
    eye = (rows == cols).astype(jnp.float32)
    a_hat = a_ref[...] + eye

    # (1, n) column-sums (matches torch .sum(dim=0)) via sublane reduction.
    d_inv_row = lax.rsqrt(jnp.sum(a_hat, axis=0, keepdims=True))
    # (n, 1) column-sums via a tiny MXU contraction (kept: (1,n)->(n,1) reshape is
    # not reliably lowered by Mosaic; this op is negligible).
    ones_col = jnp.ones((n, 1), jnp.float32)
    colsum_col = lax.dot_general(
        a_hat, ones_col,
        dimension_numbers=(((0,), (0,)), ((), ())),
        preferred_element_type=jnp.float32)
    d_inv_col = lax.rsqrt(colsum_col)

    return d_inv_col * a_hat * d_inv_row


def gcn3_eye_kernel(a_ref, w1_ref, b1_ref, w2_ref, b2_ref, w3_ref, b3_ref, o_ref):
    """Fast path: h0 == identity  =>  layer 1 is relu(S @ W1 + b1)."""
    s = _normalized_adjacency(a_ref)

    x = jnp.maximum(
        jnp.dot(s, w1_ref[...], preferred_element_type=jnp.float32) + b1_ref[...], 0.0)

    for w_ref, b_ref in ((w2_ref, b2_ref), (w3_ref, b3_ref)):
        xw = jnp.dot(x, w_ref[...], preferred_element_type=jnp.float32)      # X @ W
        x = jnp.maximum(
            jnp.dot(s, xw, preferred_element_type=jnp.float32) + b_ref[...], 0.0)  # S @ (X @ W)

    o_ref[...] = x


def gcn3_kernel(a_ref, h_ref, w1_ref, b1_ref, w2_ref, b2_ref, w3_ref, b3_ref, o_ref):
    """General path for arbitrary h0 (right-associated S @ (X @ W) everywhere)."""
    s = _normalized_adjacency(a_ref)

    x = h_ref[...]
    for w_ref, b_ref in ((w1_ref, b1_ref), (w2_ref, b2_ref), (w3_ref, b3_ref)):
        xw = jnp.dot(x, w_ref[...], preferred_element_type=jnp.float32)
        x = jnp.maximum(
            jnp.dot(s, xw, preferred_element_type=jnp.float32) + b_ref[...], 0.0)

    o_ref[...] = x


def _full_spec(shape):
    nd = len(shape)
    return pl.BlockSpec(shape, lambda i, _nd=nd: (0,) * _nd)


def prepare_params(params):
    """One-time param prep (hoisted out of the forward): transpose torch-layout
    (out, in) weights to (in, out), zero-pad feature dims to 128 lanes, make biases
    lane-dense (1, 128)."""
    def prep(w, b, in_pad):
        wt = w.T.astype(jnp.float32)                                   # (in, out)
        wt = jnp.pad(wt, ((0, in_pad - wt.shape[0]), (0, F_PAD - wt.shape[1])))
        bb = jnp.pad(b.astype(jnp.float32).reshape(1, -1),
                     ((0, 0), (0, F_PAD - b.shape[0])))
        return wt, bb

    (w1, b1), (w2, b2), (w3, b3) = params
    return (prep(w1, b1, F0),        # (200, 128)
            prep(w2, b2, F_PAD),     # (128, 128)
            prep(w3, b3, F_PAD))     # (128, 128)


def gcn3_forward(A, prepared_params, h0=None):
    """Forward pass. h0=None uses the identity fast path (matches the module, which
    always feeds torch.eye(n_V)); pass h0 explicitly for the general case."""
    (w1, b1), (w2, b2), (w3, b3) = prepared_params
    n = A.shape[0]

    if h0 is None:
        kernel = gcn3_eye_kernel
        args = (A, w1, b1, w2, b2, w3, b3)
        macs = n * n * F_PAD * 3 + n * F_PAD * F_PAD * 2 + n * n
    else:
        kernel = gcn3_kernel
        args = (A, h0, w1, b1, w2, b2, w3, b3)
        macs = n * n * F_PAD * 3 + n * F_PAD * F_PAD * 2 + n * h0.shape[1] * F_PAD + n * n

    bytes_accessed = sum(int(a.size) * 4 for a in args) + n * F_PAD * 4

    out = pl.pallas_call(
        kernel,
        out_shape=jax.ShapeDtypeStruct((n, F_PAD), jnp.float32),
        grid=(1,),
        in_specs=[_full_spec(a.shape) for a in args],
        out_specs=_full_spec((n, F_PAD)),
        compiler_params=pltpu.CompilerParams(
            dimension_semantics=("arbitrary",)),
        cost_estimate=pl.CostEstimate(
            flops=int(2 * macs),
            transcendentals=2 * n,
            bytes_accessed=int(bytes_accessed)),
    )(*args)

    return out[:, :F3]    # drop lane padding (cols 20..127 are exactly zero)


def _init_linear(key, in_f, out_f):
    # Deterministic stand-in for torch nn.Linear default init: U(-1/sqrt(in), 1/sqrt(in))
    kw, kb = jax.random.split(key)
    bound = 1.0 / jnp.sqrt(jnp.float32(in_f))
    w = jax.random.uniform(kw, (out_f, in_f), jnp.float32, -bound, bound)
    b = jax.random.uniform(kb, (out_f,), jnp.float32, -bound, bound)
    return w, b


def _reference(A, h0, params):
    # pure-JAX reference of the PyTorch forward, for correctness checks
    n = A.shape[0]
    a_hat = A + jnp.eye(n, dtype=jnp.float32)
    d = 1.0 / jnp.sqrt(a_hat.sum(axis=0))
    s = d[:, None] * a_hat * d[None, :]
    x = h0
    for w, b in params:
        x = s @ x
        x = x @ w.T + b
        x = jnp.maximum(x, 0.0)
    return x


if __name__ == "__main__":
    key = jax.random.PRNGKey(0)
    k_a, k1, k2, k3 = jax.random.split(key, 4)

    # deterministic synthetic symmetric 0/1 adjacency, zero diagonal
    upper = (jax.random.uniform(k_a, (N_V, N_V)) < 0.05).astype(jnp.float32)
    A = jnp.clip(upper + upper.T, 0.0, 1.0)
    A = A * (1.0 - jnp.eye(N_V, dtype=jnp.float32))

    # h0 = identity, exactly as in the reference module (H = torch.eye(n_V))
    h0 = jnp.eye(N_V, dtype=jnp.float32)

    params = (
        _init_linear(k1, F0, F1),
        _init_linear(k2, F1, F2),
        _init_linear(k3, F2, F3),
    )
    prepared = prepare_params(params)   # one-time prep, hoisted out of the hot path

    out_eye = jax.block_until_ready(gcn3_forward(A, prepared))          # identity fast path
    out_gen = jax.block_until_ready(gcn3_forward(A, prepared, h0=h0))   # general path

    ref = _reference(A, h0, params)
    assert out_eye.shape == (N_V, F3), out_eye.shape
    assert bool(jnp.all(jnp.isfinite(out_eye)))
    assert bool(jnp.allclose(out_eye, ref, rtol=1e-3, atol=1e-3)), "identity path mismatch"
    assert bool(jnp.allclose(out_gen, ref, rtol=1e-3, atol=1e-3)), "general path mismatch"

    print("KERNEL_OK")
</pallas_src>

<mosaic_0001>
module attributes {stable_mosaic.version = 11 : i64} {
  func.func @gcn3_eye_kernel(%arg0: i32, %arg1: memref<200x200xf32, #tpu.memory_space<vmem>>, %arg2: memref<200x128xf32, #tpu.memory_space<vmem>>, %arg3: memref<1x128xf32, #tpu.memory_space<vmem>>, %arg4: memref<128x128xf32, #tpu.memory_space<vmem>>, %arg5: memref<1x128xf32, #tpu.memory_space<vmem>>, %arg6: memref<128x128xf32, #tpu.memory_space<vmem>>, %arg7: memref<1x128xf32, #tpu.memory_space<vmem>>, %arg8: memref<200x128xf32, #tpu.memory_space<vmem>>) attributes {dimension_semantics = [#tpu.dimension_semantics<arbitrary>], iteration_bounds = array<i64: 1>, scalar_prefetch = 0 : i64, scratch_operands = 0 : i64, tpu.core_type = #tpu.core_type<tc>, window_params = [{pipeline_mode = #tpu.pipeline_mode<synchronous>, transform_indices = @transform_0, window_bounds = array<i64: 200, 200>}, {pipeline_mode = #tpu.pipeline_mode<synchronous>, transform_indices = @transform_1, window_bounds = array<i64: 200, 128>}, {pipeline_mode = #tpu.pipeline_mode<synchronous>, transform_indices = @transform_2, window_bounds = array<i64: 1, 128>}, {pipeline_mode = #tpu.pipeline_mode<synchronous>, transform_indices = @transform_3, window_bounds = array<i64: 128, 128>}, {pipeline_mode = #tpu.pipeline_mode<synchronous>, transform_indices = @transform_4, window_bounds = array<i64: 1, 128>}, {pipeline_mode = #tpu.pipeline_mode<synchronous>, transform_indices = @transform_5, window_bounds = array<i64: 128, 128>}, {pipeline_mode = #tpu.pipeline_mode<synchronous>, transform_indices = @transform_6, window_bounds = array<i64: 1, 128>}, {pipeline_mode = #tpu.pipeline_mode<synchronous>, transform_indices = @transform_7, window_bounds = array<i64: 200, 128>}]} {
    %0 = tpu.iota {dimensions = array<i32: 0>} : vector<200x200xi32>
    %1 = tpu.iota {dimensions = array<i32: 1>} : vector<200x200xi32>
    %2 = arith.cmpi eq, %0, %1 : vector<200x200xi32>
    %3 = arith.extui %2 : vector<200x200xi1> to vector<200x200xi32>
    %4 = arith.sitofp %3 : vector<200x200xi32> to vector<200x200xf32>
    %c0 = arith.constant 0 : index
    %c0_0 = arith.constant 0 : index
    %5 = vector.load %arg1[%c0, %c0_0] : memref<200x200xf32, #tpu.memory_space<vmem>>, vector<200x200xf32>
    %6 = arith.addf %5, %4 : vector<200x200xf32>
    %cst = arith.constant dense<0.000000e+00> : vector<200xf32>
    %7 = vector.multi_reduction <add>, %6, %cst [0] : vector<200x200xf32> to vector<200xf32>
    %8 = vector.shape_cast %7 : vector<200xf32> to vector<1x200xf32>
    %9 = math.rsqrt %8 : vector<1x200xf32>
    %cst_1 = arith.constant 1.000000e+00 : f32
    %10 = vector.broadcast %cst_1 : f32 to vector<200x1xf32>
    %cst_2 = arith.constant dense<0.000000e+00> : vector<200x1xf32>
    %11 = tpu.matmul %6, %10, %cst_2 {dimension_numbers = #tpu.dot_dimension_numbers<[0], [0], [1], [1], [0, 1, 1, 1], [], []>} : vector<200x200xf32>, vector<200x1xf32>, vector<200x1xf32> -> vector<200x1xf32>
    %12 = math.rsqrt %11 : vector<200x1xf32>
    %13 = vector.broadcast %12 : vector<200x1xf32> to vector<200x200xf32>
    %14 = arith.mulf %13, %6 : vector<200x200xf32>
    %15 = vector.broadcast %9 : vector<1x200xf32> to vector<200x200xf32>
    %16 = arith.mulf %14, %15 : vector<200x200xf32>
    %c0_3 = arith.constant 0 : index
    %c0_4 = arith.constant 0 : index
    %17 = vector.load %arg2[%c0_3, %c0_4] : memref<200x128xf32, #tpu.memory_space<vmem>>, vector<200x128xf32>
    %cst_5 = arith.constant dense<0.000000e+00> : vector<200x128xf32>
    %18 = tpu.matmul %16, %17, %cst_5 {dimension_numbers = #tpu.dot_dimension_numbers<[1], [0], [0], [1], [0, 0, 1, 1], [], []>} : vector<200x200xf32>, vector<200x128xf32>, vector<200x128xf32> -> vector<200x128xf32>
    %c0_6 = arith.constant 0 : index
    %c0_7 = arith.constant 0 : index
    %19 = vector.load %arg3[%c0_6, %c0_7] : memref<1x128xf32, #tpu.memory_space<vmem>>, vector<1x128xf32>
    %20 = vector.broadcast %19 : vector<1x128xf32> to vector<200x128xf32>
    %21 = arith.addf %18, %20 : vector<200x128xf32>
    %cst_8 = arith.constant 0.000000e+00 : f32
    %22 = vector.broadcast %cst_8 : f32 to vector<200x128xf32>
    %23 = arith.maximumf %21, %22 : vector<200x128xf32>
    %c0_9 = arith.constant 0 : index
    %c0_10 = arith.constant 0 : index
    %24 = vector.load %arg4[%c0_9, %c0_10] : memref<128x128xf32, #tpu.memory_space<vmem>>, vector<128x128xf32>
    %cst_11 = arith.constant dense<0.000000e+00> : vector<200x128xf32>
    %25 = tpu.matmul %23, %24, %cst_11 {dimension_numbers = #tpu.dot_dimension_numbers<[1], [0], [0], [1], [0, 0, 1, 1], [], []>} : vector<200x128xf32>, vector<128x128xf32>, vector<200x128xf32> -> vector<200x128xf32>
    %cst_12 = arith.constant dense<0.000000e+00> : vector<200x128xf32>
    %26 = tpu.matmul %16, %25, %cst_12 {dimension_numbers = #tpu.dot_dimension_numbers<[1], [0], [0], [1], [0, 0, 1, 1], [], []>} : vector<200x200xf32>, vector<200x128xf32>, vector<200x128xf32> -> vector<200x128xf32>
    %c0_13 = arith.constant 0 : index
    %c0_14 = arith.constant 0 : index
    %27 = vector.load %arg5[%c0_13, %c0_14] : memref<1x128xf32, #tpu.memory_space<vmem>>, vector<1x128xf32>
    %28 = vector.broadcast %27 : vector<1x128xf32> to vector<200x128xf32>
    %29 = arith.addf %26, %28 : vector<200x128xf32>
    %cst_15 = arith.constant 0.000000e+00 : f32
    %30 = vector.broadcast %cst_15 : f32 to vector<200x128xf32>
    %31 = arith.maximumf %29, %30 : vector<200x128xf32>
    %c0_16 = arith.constant 0 : index
    %c0_17 = arith.constant 0 : index
    %32 = vector.load %arg6[%c0_16, %c0_17] : memref<128x128xf32, #tpu.memory_space<vmem>>, vector<128x128xf32>
    %cst_18 = arith.constant dense<0.000000e+00> : vector<200x128xf32>
    %33 = tpu.matmul %31, %32, %cst_18 {dimension_numbers = #tpu.dot_dimension_numbers<[1], [0], [0], [1], [0, 0, 1, 1], [], []>} : vector<200x128xf32>, vector<128x128xf32>, vector<200x128xf32> -> vector<200x128xf32>
    %cst_19 = arith.constant dense<0.000000e+00> : vector<200x128xf32>
    %34 = tpu.matmul %16, %33, %cst_19 {dimension_numbers = #tpu.dot_dimension_numbers<[1], [0], [0], [1], [0, 0, 1, 1], [], []>} : vector<200x200xf32>, vector<200x128xf32>, vector<200x128xf32> -> vector<200x128xf32>
    %c0_20 = arith.constant 0 : index
    %c0_21 = arith.constant 0 : index
    %35 = vector.load %arg7[%c0_20, %c0_21] : memref<1x128xf32, #tpu.memory_space<vmem>>, vector<1x128xf32>
    %36 = vector.broadcast %35 : vector<1x128xf32> to vector<200x128xf32>
    %37 = arith.addf %34, %36 : vector<200x128xf32>
    %cst_22 = arith.constant 0.000000e+00 : f32
    %38 = vector.broadcast %cst_22 : f32 to vector<200x128xf32>
    %39 = arith.maximumf %37, %38 : vector<200x128xf32>
    %c0_23 = arith.constant 0 : index
    %c0_24 = arith.constant 0 : index
    %40 = vector.load %arg8[%c0_23, %c0_24] : memref<200x128xf32, #tpu.memory_space<vmem>>, vector<200x128xf32>
    tpu.vector_store %arg8[%c0_23, %c0_24], %39 {strides = array<i32>} : memref<200x128xf32, #tpu.memory_space<vmem>>, vector<200x128xf32>,
    return
  }
  func.func @transform_0(%arg0: i32) -> (i32, i32) {
    %c0_i32 = arith.constant 0 : i32
    %c0_i32_0 = arith.constant 0 : i32
    %c0_i32_1 = arith.constant 0 : i32
    return %c0_i32, %c0_i32_0 : i32, i32
  }
  func.func @transform_1(%arg0: i32) -> (i32, i32) {
    %c0_i32 = arith.constant 0 : i32
    %c0_i32_0 = arith.constant 0 : i32
    %c0_i32_1 = arith.constant 0 : i32
    return %c0_i32, %c0_i32_0 : i32, i32
  }
  func.func @transform_2(%arg0: i32) -> (i32, i32) {
    %c0_i32 = arith.constant 0 : i32
    %c0_i32_0 = arith.constant 0 : i32
    %c0_i32_1 = arith.constant 0 : i32
    return %c0_i32, %c0_i32_0 : i32, i32
  }
  func.func @transform_3(%arg0: i32) -> (i32, i32) {
    %c0_i32 = arith.constant 0 : i32
    %c0_i32_0 = arith.constant 0 : i32
    %c0_i32_1 = arith.constant 0 : i32
    return %c0_i32, %c0_i32_0 : i32, i32
  }
  func.func @transform_4(%arg0: i32) -> (i32, i32) {
    %c0_i32 = arith.constant 0 : i32
    %c0_i32_0 = arith.constant 0 : i32
    %c0_i32_1 = arith.constant 0 : i32
    return %c0_i32, %c0_i32_0 : i32, i32
  }
  func.func @transform_5(%arg0: i32) -> (i32, i32) {
    %c0_i32 = arith.constant 0 : i32
    %c0_i32_0 = arith.constant 0 : i32
    %c0_i32_1 = arith.constant 0 : i32
    return %c0_i32, %c0_i32_0 : i32, i32
  }
  func.func @transform_6(%arg0: i32) -> (i32, i32) {
    %c0_i32 = arith.constant 0 : i32
    %c0_i32_0 = arith.constant 0 : i32
    %c0_i32_1 = arith.constant 0 : i32
    return %c0_i32, %c0_i32_0 : i32, i32
  }
  func.func @transform_7(%arg0: i32) -> (i32, i32) {
    %c0_i32 = arith.constant 0 : i32
    %c0_i32_0 = arith.constant 0 : i32
    %c0_i32_1 = arith.constant 0 : i32
    return %c0_i32, %c0_i32_0 : i32, i32
  }
}

</mosaic_0001>

<llo_original>
// kernel: tpu_custom_call.1
$region0: #{tpu_custom_call.1}
  #allocation0 [shape = 'u32[]', space=smem, size = 0x4, offset = 0x4, fixed_abs, tag = 'smem constant byte address 0x4 - core index']
  #allocation1 [shape = 'u32[72,128]{1,0:T(1,128)}', space=vmem, size = 0x9000, scoped, tag = 'internal scratch']
  %s0 = inlined_call_operand.hbm [shape: f32[200,200], index: 0, kind: input, shape index: {}]
  %s1 = inlined_call_operand.hbm [shape: f32[200,128], index: 1, kind: input, shape index: {}]
  %s2 = inlined_call_operand.vmem [shape: f32[1,128], index: 2, kind: input, shape index: {}]
  %s3 = inlined_call_operand.hbm [shape: f32[128,128], index: 3, kind: input, shape index: {}]
  %s4 = inlined_call_operand.vmem [shape: f32[1,128], index: 4, kind: input, shape index: {}]
  %s5 = inlined_call_operand.hbm [shape: f32[128,128], index: 5, kind: input, shape index: {}]
  %s6 = inlined_call_operand.vmem [shape: f32[1,128], index: 6, kind: input, shape index: {}]
  %s7 = inlined_call_operand.hbm [shape: f32[200,128], index: 7, kind: output, shape index: {}]
  %s8 = sld [smem:[#allocation0]]
  $region54: #{tpu_custom_call.1} parent=0
    _
  %s10 = ssub.s32 1, %s8
  %s11 = scalar_select 0, %s10, %s8
  $region1: #{tpu_custom_call.1} parent=0
    #allocation2 [shape = 'u8[204800]{0}', space=vmem, size = 0x32000, scoped, tag = 'input window, operand 0, single buffered']
    #allocation3 [shape = 's32[1]{0}', space=sflag, size = 0x4, scoped, tag = 'scoped memory for tpu_custom_call.1']
    #allocation4 [shape = 's32[1]{0}', space=sflag, size = 0x4, scoped, tag = 'scoped memory for tpu_custom_call.1']
    #allocation5 [shape = 'u8[102400]{0}', space=vmem, size = 0x19000, scoped, tag = 'input window, operand 1, single buffered']
    #allocation6 [shape = 's32[1]{0}', space=sflag, size = 0x4, scoped, tag = 'scoped memory for tpu_custom_call.1']
    #allocation7 [shape = 'u8[65536]{0}', space=vmem, size = 0x10000, scoped, tag = 'input window, operand 3, single buffered']
    #allocation8 [shape = 'u8[65536]{0}', space=vmem, size = 0x10000, scoped, tag = 'input window, operand 5, single buffered']
    #allocation9 [shape = 's32[1]{0}', space=sflag, size = 0x4, scoped, tag = 'scoped memory for tpu_custom_call.1']
    #allocation10 [shape = 'u8[102400]{0}', space=vmem, size = 0x19000, scoped, tag = 'output window, operand 0, single buffered']
    %12 = vsyncpa [#allocation3], 0
    %13 = vsyncpa [#allocation6], 0
    %14 = vsyncpa [#allocation9], 0
    %15 = vsyncpa [#allocation4], 0
    // Predicated region
    $region2: #{tpu_custom_call.1} parent=1 // pred_check
      _
    $region3: #{tpu_custom_call.1} parent=1 // pred_check_branch
      %17 = sbr.rel (0) target = $region5
    $region4: #{tpu_custom_call.1} parent=1 // pred_region
      %19 = vsyncadd [#allocation3], 0
      %s20 = sshll.u32 %s0, 4
      %s21 = int_to_ptr.hbm [resolvable:$true] %s20
      %s22 = sshll.u32 [#allocation2], 4
      %s23 = int_to_ptr.vmem [resolvable:$true] %s22
      %28 = dma.hbm_to_vmem [thread:$0]  %s21, 6400, %s23, [#allocation3], 256, 256, 16
    $region5: #{tpu_custom_call.1} parent=1 // pred_fallthru
      _
    // Predicated region
    $region6: #{tpu_custom_call.1} parent=1 // pred_check
      _
    $region7: #{tpu_custom_call.1} parent=1 // pred_check_branch
      %30 = sbr.rel (0) target = $region9
    $region8: #{tpu_custom_call.1} parent=1 // pred_region
      %32 = vsyncadd [#allocation6], 0
      %s33 = sshll.u32 %s1, 4
      %s34 = int_to_ptr.hbm [resolvable:$true] %s33
      %s35 = sshll.u32 [#allocation5], 4
      %s36 = int_to_ptr.vmem [resolvable:$true] %s35
      %41 = dma.hbm_to_vmem [thread:$0]  %s34, 3200, %s36, [#allocation6], 128, 128, 8
    $region9: #{tpu_custom_call.1} parent=1 // pred_fallthru
      _
    // Predicated region
    $region10: #{tpu_custom_call.1} parent=1 // pred_check
      _
    $region11: #{tpu_custom_call.1} parent=1 // pred_check_branch
      %43 = sbr.rel (0) target = $region13
    $region12: #{tpu_custom_call.1} parent=1 // pred_region
      _
    $region13: #{tpu_custom_call.1} parent=1 // pred_fallthru
      _
    // Predicated region
    $region14: #{tpu_custom_call.1} parent=1 // pred_check
      _
    $region15: #{tpu_custom_call.1} parent=1 // pred_check_branch
      %45 = sbr.rel (0) target = $region17
    $region16: #{tpu_custom_call.1} parent=1 // pred_region
      %47 = vsyncadd [#allocation6], 0
      %s48 = sshll.u32 %s3, 4
      %s49 = int_to_ptr.hbm [resolvable:$true] %s48
      %s50 = sshll.u32 [#allocation7], 4
      %s51 = int_to_ptr.vmem [resolvable:$true] %s50
      %56 = dma.hbm_to_vmem [thread:$0]  %s49, 2048, %s51, [#allocation6], 128, 128, 8
    $region17: #{tpu_custom_call.1} parent=1 // pred_fallthru
      _
    // Predicated region
    $region18: #{tpu_custom_call.1} parent=1 // pred_check
      _
    $region19: #{tpu_custom_call.1} parent=1 // pred_check_branch
      %58 = sbr.rel (0) target = $region21
    $region20: #{tpu_custom_call.1} parent=1 // pred_region
      _
    $region21: #{tpu_custom_call.1} parent=1 // pred_fallthru
      _
    // Predicated region
    $region22: #{tpu_custom_call.1} parent=1 // pred_check
      _
    $region23: #{tpu_custom_call.1} parent=1 // pred_check_branch
      %60 = sbr.rel (0) target = $region25
    $region24: #{tpu_custom_call.1} parent=1 // pred_region
      %62 = vsyncadd [#allocation9], 0
      %s63 = sshll.u32 %s5, 4
      %s64 = int_to_ptr.hbm [resolvable:$true] %s63
      %s65 = sshll.u32 [#allocation8], 4
      %s66 = int_to_ptr.vmem [resolvable:$true] %s65
      %71 = dma.hbm_to_vmem [thread:$0]  %s64, 2048, %s66, [#allocation9], 128, 128, 8
    $region25: #{tpu_custom_call.1} parent=1 // pred_fallthru
      _
    // Predicated region
    $region26: #{tpu_custom_call.1} parent=1 // pred_check
      _
    $region27: #{tpu_custom_call.1} parent=1 // pred_check_branch
      %73 = sbr.rel (0) target = $region29
    $region28: #{tpu_custom_call.1} parent=1 // pred_region
      _
    $region29: #{tpu_custom_call.1} parent=1 // pred_fallthru
      _
    // Predicated region
    $region30: #{tpu_custom_call.1} parent=1 // pred_check
      _
    $region31: #{tpu_custom_call.1} parent=1 // pred_check_branch
      %75 = sbr.rel (0) target = $region33
    $region32: #{tpu_custom_call.1} parent=1 // pred_region
      %77 = dma.done [#allocation3], 6400
    $region33: #{tpu_custom_call.1} parent=1 // pred_fallthru
      _
    // Predicated region
    $region34: #{tpu_custom_call.1} parent=1 // pred_check
      _
    $region35: #{tpu_custom_call.1} parent=1 // pred_check_branch
      %79 = sbr.rel (0) target = $region37
    $region36: #{tpu_custom_call.1} parent=1 // pred_region
      %81 = dma.done [#allocation6], 3200
    $region37: #{tpu_custom_call.1} parent=1 // pred_fallthru
      _
    // Predicated region
    $region38: #{tpu_custom_call.1} parent=1 // pred_check
      _
    $region39: #{tpu_custom_call.1} parent=1 // pred_check_branch
      %83 = sbr.rel (0) target = $region41
    $region40: #{tpu_custom_call.1} parent=1 // pred_region
      %85 = dma.done [#allocation6], 2048
    $region41: #{tpu_custom_call.1} parent=1 // pred_fallthru
      _
    // Predicated region
    $region42: #{tpu_custom_call.1} parent=1 // pred_check
      _
    $region43: #{tpu_custom_call.1} parent=1 // pred_check_branch
      %87 = sbr.rel (0) target = $region45
    $region44: #{tpu_custom_call.1} parent=1 // pred_region
      %89 = dma.done [#allocation9], 2048
    $region45: #{tpu_custom_call.1} parent=1 // pred_fallthru
      _
    %v90 = vlaneseq
    %v91 = vshrl.u32 %v90, 7
    %v92 = vadd.s32 %v91, 8
    %v93 = vadd.s32 %v91, 16
    %v94 = vadd.s32 %v91, 24
    %v95 = vadd.s32 %v91, 32
    %v96 = vadd.s32 %v91, 40
    %v97 = vadd.s32 %v91, 48
    %v98 = vadd.s32 %v91, 56
    %v99 = vadd.s32 %v91, 64
    %v100 = vadd.s32 %v91, 72
    %v101 = vadd.s32 %v91, 80
    %v102 = vadd.s32 %v91, 88
    %v103 = vadd.s32 %v91, 96
    %v104 = vadd.s32 %v91, 104
    %v105 = vadd.s32 %v91, 112
    %v106 = vadd.s32 %v91, 120
    %v107 = vadd.s32 %v91, 128
    %v108 = vadd.s32 %v91, 136
    %v109 = vadd.s32 %v91, 144
    %v110 = vadd.s32 %v91, 152
    %v111 = vadd.s32 %v91, 160
    %v112 = vadd.s32 %v91, 168
    %v113 = vadd.s32 %v91, 176
    %v114 = vadd.s32 %v91, 184
    %v115 = vadd.s32 %v91, 192
    %v116 = vlaneseq
    %v117 = vand.u32 %v116, 127
    %v118 = vadd.s32 %v117, 128
    %vm119 = vcmp.eq.s32.totalorder %v91, %v117
    %vm120 = vcmp.eq.s32.totalorder %v91, %v118
    %vm121 = vcmp.eq.s32.totalorder %v92, %v117
    %vm122 = vcmp.eq.s32.totalorder %v92, %v118
    %vm123 = vcmp.eq.s32.totalorder %v93, %v117
    %vm124 = vcmp.eq.s32.totalorder %v93, %v118
    %vm125 = vcmp.eq.s32.totalorder %v94, %v117
    %vm126 = vcmp.eq.s32.totalorder %v94, %v118
    %vm127 = vcmp.eq.s32.totalorder %v95, %v117
    %vm128 = vcmp.eq.s32.totalorder %v95, %v118
    %vm129 = vcmp.eq.s32.totalorder %v96, %v117
    %vm130 = vcmp.eq.s32.totalorder %v96, %v118
    %vm131 = vcmp.eq.s32.totalorder %v97, %v117
    %vm132 = vcmp.eq.s32.totalorder %v97, %v118
    %vm133 = vcmp.eq.s32.totalorder %v98, %v117
    %vm134 = vcmp.eq.s32.totalorder %v98, %v118
    %vm135 = vcmp.eq.s32.totalorder %v99, %v117
    %vm136 = vcmp.eq.s32.totalorder %v99, %v118
    %vm137 = vcmp.eq.s32.totalorder %v100, %v117
    %vm138 = vcmp.eq.s32.totalorder %v100, %v118
    %vm139 = vcmp.eq.s32.totalorder %v101, %v117
    %vm140 = vcmp.eq.s32.totalorder %v101, %v118
    %vm141 = vcmp.eq.s32.totalorder %v102, %v117
    %vm142 = vcmp.eq.s32.totalorder %v102, %v118
    %vm143 = vcmp.eq.s32.totalorder %v103, %v117
    %vm144 = vcmp.eq.s32.totalorder %v103, %v118
    %vm145 = vcmp.eq.s32.totalorder %v104, %v117
    %vm146 = vcmp.eq.s32.totalorder %v104, %v118
    %vm147 = vcmp.eq.s32.totalorder %v105, %v117
    %vm148 = vcmp.eq.s32.totalorder %v105, %v118
    %vm149 = vcmp.eq.s32.totalorder %v106, %v117
    %vm150 = vcmp.eq.s32.totalorder %v106, %v118
    %vm151 = vcmp.eq.s32.totalorder %v107, %v117
    %vm152 = vcmp.eq.s32.totalorder %v107, %v118
    %vm153 = vcmp.eq.s32.totalorder %v108, %v117
    %vm154 = vcmp.eq.s32.totalorder %v108, %v118
    %vm155 = vcmp.eq.s32.totalorder %v109, %v117
    %vm156 = vcmp.eq.s32.totalorder %v109, %v118
    %vm157 = vcmp.eq.s32.totalorder %v110, %v117
    %vm158 = vcmp.eq.s32.totalorder %v110, %v118
    %vm159 = vcmp.eq.s32.totalorder %v111, %v117
    %vm160 = vcmp.eq.s32.totalorder %v111, %v118
    %vm161 = vcmp.eq.s32.totalorder %v112, %v117
    %vm162 = vcmp.eq.s32.totalorder %v112, %v118
    %vm163 = vcmp.eq.s32.totalorder %v113, %v117
    %vm164 = vcmp.eq.s32.totalorder %v113, %v118
    %vm165 = vcmp.eq.s32.totalorder %v114, %v117
    %vm166 = vcmp.eq.s32.totalorder %v114, %v118
    %vm167 = vcmp.eq.s32.totalorder %v115, %v117
    %vm168 = vcmp.eq.s32.totalorder %v115, %v118
    %v169 = vsel %vm119, 1, 0
    %v170 = vsel %vm120, 1, 0
    %v171 = vsel %vm121, 1, 0
    %v172 = vsel %vm122, 1, 0
    %v173 = vsel %vm123, 1, 0
    %v174 = vsel %vm124, 1, 0
    %v175 = vsel %vm125, 1, 0
    %v176 = vsel %vm126, 1, 0
    %v177 = vsel %vm127, 1, 0
    %v178 = vsel %vm128, 1, 0
    %v179 = vsel %vm129, 1, 0
    %v180 = vsel %vm130, 1, 0
    %v181 = vsel %vm131, 1, 0
    %v182 = vsel %vm132, 1, 0
    %v183 = vsel %vm133, 1, 0
    %v184 = vsel %vm134, 1, 0
    %v185 = vsel %vm135, 1, 0
    %v186 = vsel %vm136, 1, 0
    %v187 = vsel %vm137, 1, 0
    %v188 = vsel %vm138, 1, 0
    %v189 = vsel %vm139, 1, 0
    %v190 = vsel %vm140, 1, 0
    %v191 = vsel %vm141, 1, 0
    %v192 = vsel %vm142, 1, 0
    %v193 = vsel %vm143, 1, 0
    %v194 = vsel %vm144, 1, 0
    %v195 = vsel %vm145, 1, 0
    %v196 = vsel %vm146, 1, 0
    %v197 = vsel %vm147, 1, 0
    %v198 = vsel %vm148, 1, 0
    %v199 = vsel %vm149, 1, 0
    %v200 = vsel %vm150, 1, 0
    %v201 = vsel %vm151, 1, 0
    %v202 = vsel %vm152, 1, 0
    %v203 = vsel %vm153, 1, 0
    %v204 = vsel %vm154, 1, 0
    %v205 = vsel %vm155, 1, 0
    %v206 = vsel %vm156, 1, 0
    %v207 = vsel %vm157, 1, 0
    %v208 = vsel %vm158, 1, 0
    %v209 = vsel %vm159, 1, 0
    %v210 = vsel %vm160, 1, 0
    %v211 = vsel %vm161, 1, 0
    %v212 = vsel %vm162, 1, 0
    %v213 = vsel %vm163, 1, 0
    %v214 = vsel %vm164, 1, 0
    %v215 = vsel %vm165, 1, 0
    %v216 = vsel %vm166, 1, 0
    %v217 = vsel %vm167, 1, 0
    %v218 = vsel %vm168, 1, 0
    %v219 = vcvt.s32.f32 %v169
    %v220 = vcvt.s32.f32 %v170
    %v221 = vcvt.s32.f32 %v171
    %v222 = vcvt.s32.f32 %v172
    %v223 = vcvt.s32.f32 %v173
    %v224 = vcvt.s32.f32 %v174
    %v225 = vcvt.s32.f32 %v175
    %v226 = vcvt.s32.f32 %v176
    %v227 = vcvt.s32.f32 %v177
    %v228 = vcvt.s32.f32 %v178
    %v229 = vcvt.s32.f32 %v179
    %v230 = vcvt.s32.f32 %v180
    %v231 = vcvt.s32.f32 %v181
    %v232 = vcvt.s32.f32 %v182
    %v233 = vcvt.s32.f32 %v183
    %v234 = vcvt.s32.f32 %v184
    %v235 = vcvt.s32.f32 %v185
    %v236 = vcvt.s32.f32 %v186
    %v237 = vcvt.s32.f32 %v187
    %v238 = vcvt.s32.f32 %v188
    %v239 = vcvt.s32.f32 %v189
    %v240 = vcvt.s32.f32 %v190
    %v241 = vcvt.s32.f32 %v191
    %v242 = vcvt.s32.f32 %v192
    %v243 = vcvt.s32.f32 %v193
    %v244 = vcvt.s32.f32 %v194
    %v245 = vcvt.s32.f32 %v195
    %v246 = vcvt.s32.f32 %v196
    %v247 = vcvt.s32.f32 %v197
    %v248 = vcvt.s32.f32 %v198
    %v249 = vcvt.s32.f32 %v199
    %v250 = vcvt.s32.f32 %v200
    %v251 = vcvt.s32.f32 %v201
    %v252 = vcvt.s32.f32 %v202
    %v253 = vcvt.s32.f32 %v203
    %v254 = vcvt.s32.f32 %v204
    %v255 = vcvt.s32.f32 %v205
    %v256 = vcvt.s32.f32 %v206
    %v257 = vcvt.s32.f32 %v207
    %v258 = vcvt.s32.f32 %v208
    %v259 = vcvt.s32.f32 %v209
    %v260 = vcvt.s32.f32 %v210
    %v261 = vcvt.s32.f32 %v211
    %v262 = vcvt.s32.f32 %v212
    %v263 = vcvt.s32.f32 %v213
    %v264 = vcvt.s32.f32 %v214
    %v265 = vcvt.s32.f32 %v215
    %v266 = vcvt.s32.f32 %v216
    %v267 = vcvt.s32.f32 %v217
    %v268 = vcvt.s32.f32 %v218
    %v269 = vld [vmem:[#allocation2] sm:$0xff]
    %v270 = vld [vmem:[#allocation2 + $0x8] sm:$0xff]
    %v271 = vld [vmem:[#allocation2 + $0x10] sm:$0xff]
    %v272 = vld [vmem:[#allocation2 + $0x18] sm:$0xff]
    %v273 = vld [vmem:[#allocation2 + $0x20] sm:$0xff]
    %v274 = vld [vmem:[#allocation2 + $0x28] sm:$0xff]
    %v275 = vld [vmem:[#allocation2 + $0x30] sm:$0xff]
    %v276 = vld [vmem:[#allocation2 + $0x38] sm:$0xff]
    %v277 = vld [vmem:[#allocation2 + $0x40] sm:$0xff]
    %v278 = vld [vmem:[#allocation2 + $0x48] sm:$0xff]
    %v279 = vld [vmem:[#allocation2 + $0x50] sm:$0xff]
    %v280 = vld [vmem:[#allocation2 + $0x58] sm:$0xff]
    %v281 = vld [vmem:[#allocation2 + $0x60] sm:$0xff]
    %v282 = vld [vmem:[#allocation2 + $0x68] sm:$0xff]
    %v283 = vld [vmem:[#allocation2 + $0x70] sm:$0xff]
    %v284 = vld [vmem:[#allocation2 + $0x78] sm:$0xff]
    %v285 = vld [vmem:[#allocation2 + $0x80] sm:$0xff]
    %v286 = vld [vmem:[#allocation2 + $0x88] sm:$0xff]
    %v287 = vld [vmem:[#allocation2 + $0x90] sm:$0xff]
    %v288 = vld [vmem:[#allocation2 + $0x98] sm:$0xff]
    %v289 = vld [vmem:[#allocation2 + $0xa0] sm:$0xff]
    %v290 = vld [vmem:[#allocation2 + $0xa8] sm:$0xff]
    %v291 = vld [vmem:[#allocation2 + $0xb0] sm:$0xff]
    %v292 = vld [vmem:[#allocation2 + $0xb8] sm:$0xff]
    %v293 = vld [vmem:[#allocation2 + $0xc0] sm:$0xff]
    %v294 = vld [vmem:[#allocation2 + $0xc8] sm:$0xff]
    %v295 = vld [vmem:[#allocation2 + $0xd0] sm:$0xff]
    %v296 = vld [vmem:[#allocation2 + $0xd8] sm:$0xff]
    %v297 = vld [vmem:[#allocation2 + $0xe0] sm:$0xff]
    %v298 = vld [vmem:[#allocation2 + $0xe8] sm:$0xff]
    %v299 = vld [vmem:[#allocation2 + $0xf0] sm:$0xff]
    %v300 = vld [vmem:[#allocation2 + $0xf8] sm:$0xff]
    %v301 = vld [vmem:[#allocation2 + $0x100] sm:$0xff]
    %v302 = vld [vmem:[#allocation2 + $0x108] sm:$0xff]
    %v303 = vld [vmem:[#allocation2 + $0x110] sm:$0xff]
    %v304 = vld [vmem:[#allocation2 + $0x118] sm:$0xff]
    %v305 = vld [vmem:[#allocation2 + $0x120] sm:$0xff]
    %v306 = vld [vmem:[#allocation2 + $0x128] sm:$0xff]
    %v307 = vld [vmem:[#allocation2 + $0x130] sm:$0xff]
    %v308 = vld [vmem:[#allocation2 + $0x138] sm:$0xff]
    %v309 = vld [vmem:[#allocation2 + $0x140] sm:$0xff]
    %v310 = vld [vmem:[#allocation2 + $0x148] sm:$0xff]
    %v311 = vld [vmem:[#allocation2 + $0x150] sm:$0xff]
    %v312 = vld [vmem:[#allocation2 + $0x158] sm:$0xff]
    %v313 = vld [vmem:[#allocation2 + $0x160] sm:$0xff]
    %v314 = vld [vmem:[#allocation2 + $0x168] sm:$0xff]
    %v315 = vld [vmem:[#allocation2 + $0x170] sm:$0xff]
    %v316 = vld [vmem:[#allocation2 + $0x178] sm:$0xff]
    %v317 = vld [vmem:[#allocation2 + $0x180] sm:$0xff]
    %v318 = vld [vmem:[#allocation2 + $0x188] sm:$0xff]
    %v319 = vadd.f32 %v269, %v219
    %v320 = vadd.f32 %v270, %v220
    %v321 = vadd.f32 %v271, %v221
    %v322 = vadd.f32 %v272, %v222
    %v323 = vadd.f32 %v273, %v223
    %v324 = vadd.f32 %v274, %v224
    %v325 = vadd.f32 %v275, %v225
    %v326 = vadd.f32 %v276, %v226
    %v327 = vadd.f32 %v277, %v227
    %v328 = vadd.f32 %v278, %v228
    %v329 = vadd.f32 %v279, %v229
    %v330 = vadd.f32 %v280, %v230
    %v331 = vadd.f32 %v281, %v231
    %v332 = vadd.f32 %v282, %v232
    %v333 = vadd.f32 %v283, %v233
    %v334 = vadd.f32 %v284, %v234
    %v335 = vadd.f32 %v285, %v235
    %v336 = vadd.f32 %v286, %v236
    %v337 = vadd.f32 %v287, %v237
    %v338 = vadd.f32 %v288, %v238
    %v339 = vadd.f32 %v289, %v239
    %v340 = vadd.f32 %v290, %v240
    %v341 = vadd.f32 %v291, %v241
    %v342 = vadd.f32 %v292, %v242
    %v343 = vadd.f32 %v293, %v243
    %v344 = vadd.f32 %v294, %v244
    %v345 = vadd.f32 %v295, %v245
    %v346 = vadd.f32 %v296, %v246
    %v347 = vadd.f32 %v297, %v247
    %v348 = vadd.f32 %v298, %v248
    %v349 = vadd.f32 %v299, %v249
    %v350 = vadd.f32 %v300, %v250
    %v351 = vadd.f32 %v301, %v251
    %v352 = vadd.f32 %v302, %v252
    %v353 = vadd.f32 %v303, %v253
    %v354 = vadd.f32 %v304, %v254
    %v355 = vadd.f32 %v305, %v255
    %v356 = vadd.f32 %v306, %v256
    %v357 = vadd.f32 %v307, %v257
    %v358 = vadd.f32 %v308, %v258
    %v359 = vadd.f32 %v309, %v259
    %v360 = vadd.f32 %v310, %v260
    %v361 = vadd.f32 %v311, %v261
    %v362 = vadd.f32 %v312, %v262
    %v363 = vadd.f32 %v313, %v263
    %v364 = vadd.f32 %v314, %v264
    %v365 = vadd.f32 %v315, %v265
    %v366 = vadd.f32 %v316, %v266
    %v367 = vadd.f32 %v317, %v267
    %v368 = vadd.f32 %v318, %v268
    %v369 = vadd.f32 %v319, %v321
    %v370 = vadd.f32 %v369, %v323
    %v371 = vadd.f32 %v370, %v325
    %v372 = vadd.f32 %v371, %v327
    %v373 = vadd.f32 %v372, %v329
    %v374 = vadd.f32 %v373, %v331
    %v375 = vadd.f32 %v374, %v333
    %v376 = vadd.f32 %v375, %v335
    %v377 = vadd.f32 %v376, %v337
    %v378 = vadd.f32 %v377, %v339
    %v379 = vadd.f32 %v378, %v341
    %v380 = vadd.f32 %v379, %v343
    %v381 = vadd.f32 %v380, %v345
    %v382 = vadd.f32 %v381, %v347
    %v383 = vadd.f32 %v382, %v349
    %v384 = vadd.f32 %v383, %v351
    %v385 = vadd.f32 %v384, %v353
    %v386 = vadd.f32 %v385, %v355
    %v387 = vadd.f32 %v386, %v357
    %v388 = vadd.f32 %v387, %v359
    %v389 = vadd.f32 %v388, %v361
    %v390 = vadd.f32 %v389, %v363
    %v391 = vadd.f32 %v390, %v365
    %v392 = vadd.f32 %v391, %v367
    %v393 = vrot.slane %v392, 4
    %v394 = vadd.f32 %v392, %v393
    %v395 = vrot.slane %v394, 2
    %v396 = vadd.f32 %v394, %v395
    %v397 = vrot.slane %v396, 1
    %v398 = vadd.f32 %v396, %v397
    %vm399 = vcmask 588800
    %v400 = vsel %vm399, %v320, 0.0
    %v401 = vsel %vm399, %v322, 0.0
    %v402 = vadd.f32 %v400, %v401
    %v403 = vsel %vm399, %v324, 0.0
    %v404 = vadd.f32 %v402, %v403
    %v405 = vsel %vm399, %v326, 0.0
    %v406 = vadd.f32 %v404, %v405
    %v407 = vsel %vm399, %v328, 0.0
    %v408 = vadd.f32 %v406, %v407
    %v409 = vsel %vm399, %v330, 0.0
    %v410 = vadd.f32 %v408, %v409
    %v411 = vsel %vm399, %v332, 0.0
    %v412 = vadd.f32 %v410, %v411
    %v413 = vsel %vm399, %v334, 0.0
    %v414 = vadd.f32 %v412, %v413
    %v415 = vsel %vm399, %v336, 0.0
    %v416 = vadd.f32 %v414, %v415
    %v417 = vsel %vm399, %v338, 0.0
    %v418 = vadd.f32 %v416, %v417
    %v419 = vsel %vm399, %v340, 0.0
    %v420 = vadd.f32 %v418, %v419
    %v421 = vsel %vm399, %v342, 0.0
    %v422 = vadd.f32 %v420, %v421
    %v423 = vsel %vm399, %v344, 0.0
    %v424 = vadd.f32 %v422, %v423
    %v425 = vsel %vm399, %v346, 0.0
    %v426 = vadd.f32 %v424, %v425
    %v427 = vsel %vm399, %v348, 0.0
    %v428 = vadd.f32 %v426, %v427
    %v429 = vsel %vm399, %v350, 0.0
    %v430 = vadd.f32 %v428, %v429
    %v431 = vsel %vm399, %v352, 0.0
    %v432 = vadd.f32 %v430, %v431
    %v433 = vsel %vm399, %v354, 0.0
    %v434 = vadd.f32 %v432, %v433
    %v435 = vsel %vm399, %v356, 0.0
    %v436 = vadd.f32 %v434, %v435
    %v437 = vsel %vm399, %v358, 0.0
    %v438 = vadd.f32 %v436, %v437
    %v439 = vsel %vm399, %v360, 0.0
    %v440 = vadd.f32 %v438, %v439
    %v441 = vsel %vm399, %v362, 0.0
    %v442 = vadd.f32 %v440, %v441
    %v443 = vsel %vm399, %v364, 0.0
    %v444 = vadd.f32 %v442, %v443
    %v445 = vsel %vm399, %v366, 0.0
    %v446 = vadd.f32 %v444, %v445
    %v447 = vsel %vm399, %v368, 0.0
    %v448 = vadd.f32 %v446, %v447
    %v449 = vrot.slane %v448, 4
    %v450 = vadd.f32 %v448, %v449
    %v451 = vrot.slane %v450, 2
    %v452 = vadd.f32 %v450, %v451
    %v453 = vrot.slane %v452, 1
    %v454 = vadd.f32 %v452, %v453
    %v455 = vrsqrt.pop %v398
    %v456 = vmul.f32 %v455, %v398
    %v457 = vmul.f32 %v456, %v455
    %v458 = vmul.f32 0.5, %v457
    %v459 = vsub.f32 1.5, %v458
    %v460 = vmul.f32 %v455, %v459
    %vm461 = vweird.f32 %v398
    %vm462 = vweird.f32 %v455
    %vm463 = vmor %vm461, %vm462
    %v464 = vsel %vm463, %v455, %v460
    %v465 = vrsqrt.pop %v454
    %v466 = vmul.f32 %v465, %v454
    %v467 = vmul.f32 %v466, %v465
    %v468 = vmul.f32 0.5, %v467
    %v469 = vsub.f32 1.5, %v468
    %v470 = vmul.f32 %v465, %v469
    %vm471 = vweird.f32 %v454
    %vm472 = vweird.f32 %v465
    %vm473 = vmor %vm471, %vm472
    %v474 = vsel %vm473, %v465, %v470
    %475 = vxpose.xlu0.b32.start [1/16] %v319, 128
    %476 = vxpose.xlu0.b32.cont [2/16] %v321, 128
    %477 = vxpose.xlu0.b32.cont [3/16] %v323, 128
    %478 = vxpose.xlu0.b32.cont [4/16] %v325, 128
    %479 = vxpose.xlu0.b32.cont [5/16] %v327, 128
    %480 = vxpose.xlu0.b32.cont [6/16] %v329, 128
    %481 = vxpose.xlu0.b32.cont [7/16] %v331, 128
    %482 = vxpose.xlu0.b32.cont [8/16] %v333, 128
    %483 = vxpose.xlu0.b32.cont [9/16] %v335, 128
    %484 = vxpose.xlu0.b32.cont [10/16] %v337, 128
    %485 = vxpose.xlu0.b32.cont [11/16] %v339, 128
    %486 = vxpose.xlu0.b32.cont [12/16] %v341, 128
    %487 = vxpose.xlu0.b32.cont [13/16] %v343, 128
    %488 = vxpose.xlu0.b32.cont [14/16] %v345, 128
    %489 = vxpose.xlu0.b32.cont [15/16] %v347, 128
    %490 = vxpose.xlu0.b32.end [16/16] %v349, 128
    %v491 = vpop.trf.xlu0
    %v492 = vpop.trf.xlu0
    %v493 = vpop.trf.xlu0
    %v494 = vpop.trf.xlu0
    %v495 = vpop.trf.xlu0
    %v496 = vpop.trf.xlu0
    %v497 = vpop.trf.xlu0
    %v498 = vpop.trf.xlu0
    %v499 = vpop.trf.xlu0
    %v500 = vpop.trf.xlu0
    %v501 = vpop.trf.xlu0
    %v502 = vpop.trf.xlu0
    %v503 = vpop.trf.xlu0
    %v504 = vpop.trf.xlu0
    %v505 = vpop.trf.xlu0
    %v506 = vpop.trf.xlu0
    %507 = vxpose.xlu0.b32.start [1/16] %v320, 128
    %508 = vxpose.xlu0.b32.cont [2/16] %v322, 128
    %509 = vxpose.xlu0.b32.cont [3/16] %v324, 128
    %510 = vxpose.xlu0.b32.cont [4/16] %v326, 128
    %511 = vxpose.xlu0.b32.cont [5/16] %v328, 128
    %512 = vxpose.xlu0.b32.cont [6/16] %v330, 128
    %513 = vxpose.xlu0.b32.cont [7/16] %v332, 128
    %514 = vxpose.xlu0.b32.cont [8/16] %v334, 128
    %515 = vxpose.xlu0.b32.cont [9/16] %v336, 128
    %516 = vxpose.xlu0.b32.cont [10/16] %v338, 128
    %517 = vxpose.xlu0.b32.cont [11/16] %v340, 128
    %518 = vxpose.xlu0.b32.cont [12/16] %v342, 128
    %519 = vxpose.xlu0.b32.cont [13/16] %v344, 128
    %520 = vxpose.xlu0.b32.cont [14/16] %v346, 128
    %521 = vxpose.xlu0.b32.cont [15/16] %v348, 128
    %522 = vxpose.xlu0.b32.end [16/16] %v350, 128
    %v523 = vpop.trf.xlu0
    %v524 = vpop.trf.xlu0
    %v525 = vpop.trf.xlu0
    %v526 = vpop.trf.xlu0
    %v527 = vpop.trf.xlu0
    %v528 = vpop.trf.xlu0
    %v529 = vpop.trf.xlu0
    %v530 = vpop.trf.xlu0
    %v531 = vpop.trf.xlu0
    %v532 = vpop.trf.xlu0
    %v533 = vpop.trf.xlu0
    %v534 = vpop.trf.xlu0
    %v535 = vpop.trf.xlu0
    %v536 = vpop.trf.xlu0
    %v537 = vpop.trf.xlu0
    %v538 = vpop.trf.xlu0
    %539 = vxpose.xlu0.b32.start [1/16] %v351, 128
    %540 = vxpose.xlu0.b32.cont [2/16] %v353, 128
    %541 = vxpose.xlu0.b32.cont [3/16] %v355, 128
    %542 = vxpose.xlu0.b32.cont [4/16] %v357, 128
    %543 = vxpose.xlu0.b32.cont [5/16] %v359, 128
    %544 = vxpose.xlu0.b32.cont [6/16] %v361, 128
    %545 = vxpose.xlu0.b32.cont [7/16] %v363, 128
    %546 = vxpose.xlu0.b32.cont [8/16] %v365, 128
    %547 = vxpose.xlu0.b32.cont [9/16] %v367, 128
    %548 = vxpose.xlu0.b32.cont [10/16] 0.0, 128
    %549 = vxpose.xlu0.b32.cont [11/16] 0.0, 128
    %550 = vxpose.xlu0.b32.cont [12/16] 0.0, 128
    %551 = vxpose.xlu0.b32.cont [13/16] 0.0, 128
    %552 = vxpose.xlu0.b32.cont [14/16] 0.0, 128
    %553 = vxpose.xlu0.b32.cont [15/16] 0.0, 128
    %554 = vxpose.xlu0.b32.end [16/16] 0.0, 128
    %v555 = vpop.trf.xlu0
    %v556 = vpop.trf.xlu0
    %v557 = vpop.trf.xlu0
    %v558 = vpop.trf.xlu0
    %v559 = vpop.trf.xlu0
    %v560 = vpop.trf.xlu0
    %v561 = vpop.trf.xlu0
    %v562 = vpop.trf.xlu0
    %v563 = vpop.trf.xlu0
    %v564 = vpop.trf.xlu0
    %v565 = vpop.trf.xlu0
    %v566 = vpop.trf.xlu0
    %v567 = vpop.trf.xlu0
    %v568 = vpop.trf.xlu0
    %v569 = vpop.trf.xlu0
    %v570 = vpop.trf.xlu0
    %571 = vxpose.xlu0.b32.start [1/16] %v352, 128
    %572 = vxpose.xlu0.b32.cont [2/16] %v354, 128
    %573 = vxpose.xlu0.b32.cont [3/16] %v356, 128
    %574 = vxpose.xlu0.b32.cont [4/16] %v358, 128
    %575 = vxpose.xlu0.b32.cont [5/16] %v360, 128
    %576 = vxpose.xlu0.b32.cont [6/16] %v362, 128
    %577 = vxpose.xlu0.b32.cont [7/16] %v364, 128
    %578 = vxpose.xlu0.b32.cont [8/16] %v366, 128
    %579 = vxpose.xlu0.b32.cont [9/16] %v368, 128
    %580 = vxpose.xlu0.b32.cont [10/16] 0.0, 128
    %581 = vxpose.xlu0.b32.cont [11/16] 0.0, 128
    %582 = vxpose.xlu0.b32.cont [12/16] 0.0, 128
    %583 = vxpose.xlu0.b32.cont [13/16] 0.0, 128
    %584 = vxpose.xlu0.b32.cont [14/16] 0.0, 128
    %585 = vxpose.xlu0.b32.cont [15/16] 0.0, 128
    %586 = vxpose.xlu0.b32.end [16/16] 0.0, 128
    %v587 = vpop.trf.xlu0
    %v588 = vpop.trf.xlu0
    %v589 = vpop.trf.xlu0
    %v590 = vpop.trf.xlu0
    %v591 = vpop.trf.xlu0
    %v592 = vpop.trf.xlu0
    %v593 = vpop.trf.xlu0
    %v594 = vpop.trf.xlu0
    %v595 = vpop.trf.xlu0
    %v596 = vpop.trf.xlu0
    %v597 = vpop.trf.xlu0
    %v598 = vpop.trf.xlu0
    %v599 = vpop.trf.xlu0
    %v600 = vpop.trf.xlu0
    %v601 = vpop.trf.xlu0
    %v602 = vpop.trf.xlu0
    %v604 = vsel %vm399, %v555, 0
    %v607 = vsel %vm399, %v556, 0
    %v610 = vsel %vm399, %v557, 0
    %v613 = vsel %vm399, %v558, 0
    %v616 = vsel %vm399, %v559, 0
    %v619 = vsel %vm399, %v560, 0
    %v622 = vsel %vm399, %v561, 0
    %v625 = vsel %vm399, %v562, 0
    %v628 = vsel %vm399, %v563, 0
    %v631 = vsel %vm399, %v564, 0
    %v634 = vsel %vm399, %v565, 0
    %v637 = vsel %vm399, %v566, 0
    %v640 = vsel %vm399, %v567, 0
    %v643 = vsel %vm399, %v568, 0
    %v646 = vsel %vm399, %v569, 0
    %v649 = vsel %vm399, %v570, 0
    %v652 = vsel %vm399, %v587, 0
    %v655 = vsel %vm399, %v588, 0
    %v658 = vsel %vm399, %v589, 0
    %v661 = vsel %vm399, %v590, 0
    %v664 = vsel %vm399, %v591, 0
    %v667 = vsel %vm399, %v592, 0
    %v670 = vsel %vm399, %v593, 0
    %v673 = vsel %vm399, %v594, 0
    %v676 = vsel %vm399, %v595, 0
    %678 = vmatpush.msra.mxu0 1.0
    %679 = vmatpush.msra.mxu0 1.0
    %680 = vmatpush.msra.mxu0 1.0
    %681 = vmatpush.msra.mxu0 1.0
    %682 = vmatpush.msra.mxu0 1.0
    %683 = vmatpush.msra.mxu0 1.0
    %684 = vmatpush.msra.mxu0 1.0
    %685 = vmatpush.msra.mxu0 1.0
    %686 = vmatpush.msra.mxu0 1.0
    %687 = vmatpush.msra.mxu0 1.0
    %688 = vmatpush.msra.mxu0 1.0
    %689 = vmatpush.msra.mxu0 1.0
    %690 = vmatpush.msra.mxu0 1.0
    %691 = vmatpush.msra.mxu0 1.0
    %692 = vmatpush.msra.mxu0 1.0
    %693 = vmatpush.msra.mxu0 1.0
    %694 = vmatmul.f32.gmra.mxu0 %v491
    %v695 = vpop.f32.mrf.mxu0
    %v696 = vadd.f32 0.0, %v695
    %697 = vmatmul.f32.gmra.mxu0 %v492
    %v698 = vpop.f32.mrf.mxu0
    %v699 = vadd.f32 0.0, %v698
    %700 = vmatmul.f32.gmra.mxu0 %v493
    %v701 = vpop.f32.mrf.mxu0
    %v702 = vadd.f32 0.0, %v701
    %703 = vmatmul.f32.gmra.mxu0 %v494
    %v704 = vpop.f32.mrf.mxu0
    %v705 = vadd.f32 0.0, %v704
    %706 = vmatmul.f32.gmra.mxu0 %v495
    %v707 = vpop.f32.mrf.mxu0
    %v708 = vadd.f32 0.0, %v707
    %709 = vmatmul.f32.gmra.mxu0 %v496
    %v710 = vpop.f32.mrf.mxu0
    %v711 = vadd.f32 0.0, %v710
    %712 = vmatmul.f32.gmra.mxu0 %v497
    %v713 = vpop.f32.mrf.mxu0
    %v714 = vadd.f32 0.0, %v713
    %715 = vmatmul.f32.gmra.mxu0 %v498
    %v716 = vpop.f32.mrf.mxu0
    %v717 = vadd.f32 0.0, %v716
    %718 = vmatmul.f32.gmra.mxu0 %v499
    %v719 = vpop.f32.mrf.mxu0
    %v720 = vadd.f32 0.0, %v719
    %721 = vmatmul.f32.gmra.mxu0 %v500
    %v722 = vpop.f32.mrf.mxu0
    %v723 = vadd.f32 0.0, %v722
    %724 = vmatmul.f32.gmra.mxu0 %v501
    %v725 = vpop.f32.mrf.mxu0
    %v726 = vadd.f32 0.0, %v725
    %727 = vmatmul.f32.gmra.mxu0 %v502
    %v728 = vpop.f32.mrf.mxu0
    %v729 = vadd.f32 0.0, %v728
    %730 = vmatmul.f32.gmra.mxu0 %v503
    %v731 = vpop.f32.mrf.mxu0
    %v732 = vadd.f32 0.0, %v731
    %733 = vmatmul.f32.gmra.mxu0 %v504
    %v734 = vpop.f32.mrf.mxu0
    %v735 = vadd.f32 0.0, %v734
    %736 = vmatmul.f32.gmra.mxu0 %v505
    %v737 = vpop.f32.mrf.mxu0
    %v738 = vadd.f32 0.0, %v737
    %739 = vmatmul.f32.gmra.mxu0 %v506
    %v740 = vpop.f32.mrf.mxu0
    %v741 = vadd.f32 0.0, %v740
    %742 = vmatmul.f32.gmra.mxu0 %v523
    %v743 = vpop.f32.mrf.mxu0
    %v744 = vadd.f32 0.0, %v743
    %745 = vmatmul.f32.gmra.mxu0 %v524
    %v746 = vpop.f32.mrf.mxu0
    %v747 = vadd.f32 0.0, %v746
    %748 = vmatmul.f32.gmra.mxu0 %v525
    %v749 = vpop.f32.mrf.mxu0
    %v750 = vadd.f32 0.0, %v749
    %751 = vmatmul.f32.gmra.mxu0 %v526
    %v752 = vpop.f32.mrf.mxu0
    %v753 = vadd.f32 0.0, %v752
    %754 = vmatmul.f32.gmra.mxu0 %v527
    %v755 = vpop.f32.mrf.mxu0
    %v756 = vadd.f32 0.0, %v755
    %757 = vmatmul.f32.gmra.mxu0 %v528
    %v758 = vpop.f32.mrf.mxu0
    %v759 = vadd.f32 0.0, %v758
    %760 = vmatmul.f32.gmra.mxu0 %v529
    %v761 = vpop.f32.mrf.mxu0
    %v762 = vadd.f32 0.0, %v761
    %763 = vmatmul.f32.gmra.mxu0 %v530
    %v764 = vpop.f32.mrf.mxu0
    %v765 = vadd.f32 0.0, %v764
    %766 = vmatmul.f32.gmra.mxu0 %v531
    %v767 = vpop.f32.mrf.mxu0
    %v768 = vadd.f32 0.0, %v767
    %769 = vdwg.mxu0
    %770 = vmatpush.msra.mxu0 0.0
    %771 = vmatpush.msra.mxu0 0.0
    %772 = vmatpush.msra.mxu0 0.0
    %773 = vmatpush.msra.mxu0 0.0
    %774 = vmatpush.msra.mxu0 0.0
    %775 = vmatpush.msra.mxu0 0.0
    %776 = vmatpush.msra.mxu0 0.0
    %777 = vmatpush.msra.mxu0 1.0
    %778 = vmatpush.msra.mxu0 1.0
    %779 = vmatpush.msra.mxu0 1.0
    %780 = vmatpush.msra.mxu0 1.0
    %781 = vmatpush.msra.mxu0 1.0
    %782 = vmatpush.msra.mxu0 1.0
    %783 = vmatpush.msra.mxu0 1.0
    %784 = vmatpush.msra.mxu0 1.0
    %785 = vmatpush.msra.mxu0 1.0
    %786 = vmatmul.f32.gmra.mxu0 %v604
    %v787 = vpop.f32.mrf.mxu0
    %v788 = vadd.f32 %v696, %v787
    %789 = vmatmul.f32.gmra.mxu0 %v607
    %v790 = vpop.f32.mrf.mxu0
    %v791 = vadd.f32 %v699, %v790
    %792 = vmatmul.f32.gmra.mxu0 %v610
    %v793 = vpop.f32.mrf.mxu0
    %v794 = vadd.f32 %v702, %v793
    %795 = vmatmul.f32.gmra.mxu0 %v613
    %v796 = vpop.f32.mrf.mxu0
    %v797 = vadd.f32 %v705, %v796
    %798 = vmatmul.f32.gmra.mxu0 %v616
    %v799 = vpop.f32.mrf.mxu0
    %v800 = vadd.f32 %v708, %v799
    %801 = vmatmul.f32.gmra.mxu0 %v619
    %v802 = vpop.f32.mrf.mxu0
    %v803 = vadd.f32 %v711, %v802
    %804 = vmatmul.f32.gmra.mxu0 %v622
    %v805 = vpop.f32.mrf.mxu0
    %v806 = vadd.f32 %v714, %v805
    %807 = vmatmul.f32.gmra.mxu0 %v625
    %v808 = vpop.f32.mrf.mxu0
    %v809 = vadd.f32 %v717, %v808
    %810 = vmatmul.f32.gmra.mxu0 %v628
    %v811 = vpop.f32.mrf.mxu0
    %v812 = vadd.f32 %v720, %v811
    %813 = vmatmul.f32.gmra.mxu0 %v631
    %v814 = vpop.f32.mrf.mxu0
    %v815 = vadd.f32 %v723, %v814
    %816 = vmatmul.f32.gmra.mxu0 %v634
    %v817 = vpop.f32.mrf.mxu0
    %v818 = vadd.f32 %v726, %v817
    %819 = vmatmul.f32.gmra.mxu0 %v637
    %v820 = vpop.f32.mrf.mxu0
    %v821 = vadd.f32 %v729, %v820
    %822 = vmatmul.f32.gmra.mxu0 %v640
    %v823 = vpop.f32.mrf.mxu0
    %v824 = vadd.f32 %v732, %v823
    %825 = vmatmul.f32.gmra.mxu0 %v643
    %v826 = vpop.f32.mrf.mxu0
    %v827 = vadd.f32 %v735, %v826
    %828 = vmatmul.f32.gmra.mxu0 %v646
    %v829 = vpop.f32.mrf.mxu0
    %v830 = vadd.f32 %v738, %v829
    %831 = vmatmul.f32.gmra.mxu0 %v649
    %v832 = vpop.f32.mrf.mxu0
    %v833 = vadd.f32 %v741, %v832
    %834 = vmatmul.f32.gmra.mxu0 %v652
    %v835 = vpop.f32.mrf.mxu0
    %v836 = vadd.f32 %v744, %v835
    %837 = vmatmul.f32.gmra.mxu0 %v655
    %v838 = vpop.f32.mrf.mxu0
    %v839 = vadd.f32 %v747, %v838
    %840 = vmatmul.f32.gmra.mxu0 %v658
    %v841 = vpop.f32.mrf.mxu0
    %v842 = vadd.f32 %v750, %v841
    %843 = vmatmul.f32.gmra.mxu0 %v661
    %v844 = vpop.f32.mrf.mxu0
    %v845 = vadd.f32 %v753, %v844
    %846 = vmatmul.f32.gmra.mxu0 %v664
    %v847 = vpop.f32.mrf.mxu0
    %v848 = vadd.f32 %v756, %v847
    %849 = vmatmul.f32.gmra.mxu0 %v667
    %v850 = vpop.f32.mrf.mxu0
    %v851 = vadd.f32 %v759, %v850
    %852 = vmatmul.f32.gmra.mxu0 %v670
    %v853 = vpop.f32.mrf.mxu0
    %v854 = vadd.f32 %v762, %v853
    %855 = vmatmul.f32.gmra.mxu0 %v673
    %v856 = vpop.f32.mrf.mxu0
    %v857 = vadd.f32 %v765, %v856
    %858 = vmatmul.f32.gmra.mxu0 %v676
    %v859 = vpop.f32.mrf.mxu0
    %v860 = vadd.f32 %v768, %v859
    %861 = vdwg.mxu0
    %v862 = vrsqrt.pop %v788
    %v863 = vmul.f32 %v862, %v788
    %v864 = vmul.f32 %v863, %v862
    %v865 = vmul.f32 0.5, %v864
    %v866 = vsub.f32 1.5, %v865
    %v867 = vmul.f32 %v862, %v866
    %vm868 = vweird.f32 %v788
    %vm869 = vweird.f32 %v862
    %vm870 = vmor %vm868, %vm869
    %v871 = vsel %vm870, %v862, %v867
    %v872 = vrsqrt.pop %v791
    %v873 = vmul.f32 %v872, %v791
    %v874 = vmul.f32 %v873, %v872
    %v875 = vmul.f32 0.5, %v874
    %v876 = vsub.f32 1.5, %v875
    %v877 = vmul.f32 %v872, %v876
    %vm878 = vweird.f32 %v791
    %vm879 = vweird.f32 %v872
    %vm880 = vmor %vm878, %vm879
    %v881 = vsel %vm880, %v872, %v877
    %v882 = vrsqrt.pop %v794
    %v883 = vmul.f32 %v882, %v794
    %v884 = vmul.f32 %v883, %v882
    %v885 = vmul.f32 0.5, %v884
    %v886 = vsub.f32 1.5, %v885
    %v887 = vmul.f32 %v882, %v886
    %vm888 = vweird.f32 %v794
    %vm889 = vweird.f32 %v882
    %vm890 = vmor %vm888, %vm889
    %v891 = vsel %vm890, %v882, %v887
    %v892 = vrsqrt.pop %v797
    %v893 = vmul.f32 %v892, %v797
    %v894 = vmul.f32 %v893, %v892
    %v895 = vmul.f32 0.5, %v894
    %v896 = vsub.f32 1.5, %v895
    %v897 = vmul.f32 %v892, %v896
    %vm898 = vweird.f32 %v797
    %vm899 = vweird.f32 %v892
    %vm900 = vmor %vm898, %vm899
    %v901 = vsel %vm900, %v892, %v897
    %v902 = vrsqrt.pop %v800
    %v903 = vmul.f32 %v902, %v800
    %v904 = vmul.f32 %v903, %v902
    %v905 = vmul.f32 0.5, %v904
    %v906 = vsub.f32 1.5, %v905
    %v907 = vmul.f32 %v902, %v906
    %vm908 = vweird.f32 %v800
    %vm909 = vweird.f32 %v902
    %vm910 = vmor %vm908, %vm909
    %v911 = vsel %vm910, %v902, %v907
    %v912 = vrsqrt.pop %v803
    %v913 = vmul.f32 %v912, %v803
    %v914 = vmul.f32 %v913, %v912
    %v915 = vmul.f32 0.5, %v914
    %v916 = vsub.f32 1.5, %v915
    %v917 = vmul.f32 %v912, %v916
    %vm918 = vweird.f32 %v803
    %vm919 = vweird.f32 %v912
    %vm920 = vmor %vm918, %vm919
    %v921 = vsel %vm920, %v912, %v917
    %v922 = vrsqrt.pop %v806
    %v923 = vmul.f32 %v922, %v806
    %v924 = vmul.f32 %v923, %v922
    %v925 = vmul.f32 0.5, %v924
    %v926 = vsub.f32 1.5, %v925
    %v927 = vmul.f32 %v922, %v926
    %vm928 = vweird.f32 %v806
    %vm929 = vweird.f32 %v922
    %vm930 = vmor %vm928, %vm929
    %v931 = vsel %vm930, %v922, %v927
    %v932 = vrsqrt.pop %v809
    %v933 = vmul.f32 %v932, %v809
    %v934 = vmul.f32 %v933, %v932
    %v935 = vmul.f32 0.5, %v934
    %v936 = vsub.f32 1.5, %v935
    %v937 = vmul.f32 %v932, %v936
    %vm938 = vweird.f32 %v809
    %vm939 = vweird.f32 %v932
    %vm940 = vmor %vm938, %vm939
    %v941 = vsel %vm940, %v932, %v937
    %v942 = vrsqrt.pop %v812
    %v943 = vmul.f32 %v942, %v812
    %v944 = vmul.f32 %v943, %v942
    %v945 = vmul.f32 0.5, %v944
    %v946 = vsub.f32 1.5, %v945
    %v947 = vmul.f32 %v942, %v946
    %vm948 = vweird.f32 %v812
    %vm949 = vweird.f32 %v942
    %vm950 = vmor %vm948, %vm949
    %v951 = vsel %vm950, %v942, %v947
    %v952 = vrsqrt.pop %v815
    %v953 = vmul.f32 %v952, %v815
    %v954 = vmul.f32 %v953, %v952
    %v955 = vmul.f32 0.5, %v954
    %v956 = vsub.f32 1.5, %v955
    %v957 = vmul.f32 %v952, %v956
    %vm958 = vweird.f32 %v815
    %vm959 = vweird.f32 %v952
    %vm960 = vmor %vm958, %vm959
    %v961 = vsel %vm960, %v952, %v957
    %v962 = vrsqrt.pop %v818
    %v963 = vmul.f32 %v962, %v818
    %v964 = vmul.f32 %v963, %v962
    %v965 = vmul.f32 0.5, %v964
    %v966 = vsub.f32 1.5, %v965
    %v967 = vmul.f32 %v962, %v966
    %vm968 = vweird.f32 %v818
    %vm969 = vweird.f32 %v962
    %vm970 = vmor %vm968, %vm969
    %v971 = vsel %vm970, %v962, %v967
    %v972 = vrsqrt.pop %v821
    %v973 = vmul.f32 %v972, %v821
    %v974 = vmul.f32 %v973, %v972
    %v975 = vmul.f32 0.5, %v974
    %v976 = vsub.f32 1.5, %v975
    %v977 = vmul.f32 %v972, %v976
    %vm978 = vweird.f32 %v821
    %vm979 = vweird.f32 %v972
    %vm980 = vmor %vm978, %vm979
    %v981 = vsel %vm980, %v972, %v977
    %v982 = vrsqrt.pop %v824
    %v983 = vmul.f32 %v982, %v824
    %v984 = vmul.f32 %v983, %v982
    %v985 = vmul.f32 0.5, %v984
    %v986 = vsub.f32 1.5, %v985
    %v987 = vmul.f32 %v982, %v986
    %vm988 = vweird.f32 %v824
    %vm989 = vweird.f32 %v982
    %vm990 = vmor %vm988, %vm989
    %v991 = vsel %vm990, %v982, %v987
    %v992 = vrsqrt.pop %v827
    %v993 = vmul.f32 %v992, %v827
    %v994 = vmul.f32 %v993, %v992
    %v995 = vmul.f32 0.5, %v994
    %v996 = vsub.f32 1.5, %v995
    %v997 = vmul.f32 %v992, %v996
    %vm998 = vweird.f32 %v827
    %vm999 = vweird.f32 %v992
    %vm1000 = vmor %vm998, %vm999
    %v1001 = vsel %vm1000, %v992, %v997
    %v1002 = vrsqrt.pop %v830
    %v1003 = vmul.f32 %v1002, %v830
    %v1004 = vmul.f32 %v1003, %v1002
    %v1005 = vmul.f32 0.5, %v1004
    %v1006 = vsub.f32 1.5, %v1005
    %v1007 = vmul.f32 %v1002, %v1006
    %vm1008 = vweird.f32 %v830
    %vm1009 = vweird.f32 %v1002
    %vm1010 = vmor %vm1008, %vm1009
    %v1011 = vsel %vm1010, %v1002, %v1007
    %v1012 = vrsqrt.pop %v833
    %v1013 = vmul.f32 %v1012, %v833
    %v1014 = vmul.f32 %v1013, %v1012
    %v1015 = vmul.f32 0.5, %v1014
    %v1016 = vsub.f32 1.5, %v1015
    %v1017 = vmul.f32 %v1012, %v1016
    %vm1018 = vweird.f32 %v833
    %vm1019 = vweird.f32 %v1012
    %vm1020 = vmor %vm1018, %vm1019
    %v1021 = vsel %vm1020, %v1012, %v1017
    %v1022 = vrsqrt.pop %v836
    %v1023 = vmul.f32 %v1022, %v836
    %v1024 = vmul.f32 %v1023, %v1022
    %v1025 = vmul.f32 0.5, %v1024
    %v1026 = vsub.f32 1.5, %v1025
    %v1027 = vmul.f32 %v1022, %v1026
    %vm1028 = vweird.f32 %v836
    %vm1029 = vweird.f32 %v1022
    %vm1030 = vmor %vm1028, %vm1029
    %v1031 = vsel %vm1030, %v1022, %v1027
    %v1032 = vrsqrt.pop %v839
    %v1033 = vmul.f32 %v1032, %v839
    %v1034 = vmul.f32 %v1033, %v1032
    %v1035 = vmul.f32 0.5, %v1034
    %v1036 = vsub.f32 1.5, %v1035
    %v1037 = vmul.f32 %v1032, %v1036
    %vm1038 = vweird.f32 %v839
    %vm1039 = vweird.f32 %v1032
    %vm1040 = vmor %vm1038, %vm1039
    %v1041 = vsel %vm1040, %v1032, %v1037
    %v1042 = vrsqrt.pop %v842
    %v1043 = vmul.f32 %v1042, %v842
    %v1044 = vmul.f32 %v1043, %v1042
    %v1045 = vmul.f32 0.5, %v1044
    %v1046 = vsub.f32 1.5, %v1045
    %v1047 = vmul.f32 %v1042, %v1046
    %vm1048 = vweird.f32 %v842
    %vm1049 = vweird.f32 %v1042
    %vm1050 = vmor %vm1048, %vm1049
    %v1051 = vsel %vm1050, %v1042, %v1047
    %v1052 = vrsqrt.pop %v845
    %v1053 = vmul.f32 %v1052, %v845
    %v1054 = vmul.f32 %v1053, %v1052
    %v1055 = vmul.f32 0.5, %v1054
    %v1056 = vsub.f32 1.5, %v1055
    %v1057 = vmul.f32 %v1052, %v1056
    %vm1058 = vweird.f32 %v845
    %vm1059 = vweird.f32 %v1052
    %vm1060 = vmor %vm1058, %vm1059
    %v1061 = vsel %vm1060, %v1052, %v1057
    %v1062 = vrsqrt.pop %v848
    %v1063 = vmul.f32 %v1062, %v848
    %v1064 = vmul.f32 %v1063, %v1062
    %v1065 = vmul.f32 0.5, %v1064
    %v1066 = vsub.f32 1.5, %v1065
    %v1067 = vmul.f32 %v1062, %v1066
    %vm1068 = vweird.f32 %v848
    %vm1069 = vweird.f32 %v1062
    %vm1070 = vmor %vm1068, %vm1069
    %v1071 = vsel %vm1070, %v1062, %v1067
    %v1072 = vrsqrt.pop %v851
    %v1073 = vmul.f32 %v1072, %v851
    %v1074 = vmul.f32 %v1073, %v1072
    %v1075 = vmul.f32 0.5, %v1074
    %v1076 = vsub.f32 1.5, %v1075
    %v1077 = vmul.f32 %v1072, %v1076
    %vm1078 = vweird.f32 %v851
    %vm1079 = vweird.f32 %v1072
    %vm1080 = vmor %vm1078, %vm1079
    %v1081 = vsel %vm1080, %v1072, %v1077
    %v1082 = vrsqrt.pop %v854
    %v1083 = vmul.f32 %v1082, %v854
    %v1084 = vmul.f32 %v1083, %v1082
    %v1085 = vmul.f32 0.5, %v1084
    %v1086 = vsub.f32 1.5, %v1085
    %v1087 = vmul.f32 %v1082, %v1086
    %vm1088 = vweird.f32 %v854
    %vm1089 = vweird.f32 %v1082
    %vm1090 = vmor %vm1088, %vm1089
    %v1091 = vsel %vm1090, %v1082, %v1087
    %v1092 = vrsqrt.pop %v857
    %v1093 = vmul.f32 %v1092, %v857
    %v1094 = vmul.f32 %v1093, %v1092
    %v1095 = vmul.f32 0.5, %v1094
    %v1096 = vsub.f32 1.5, %v1095
    %v1097 = vmul.f32 %v1092, %v1096
    %vm1098 = vweird.f32 %v857
    %vm1099 = vweird.f32 %v1092
    %vm1100 = vmor %vm1098, %vm1099
    %v1101 = vsel %vm1100, %v1092, %v1097
    %v1102 = vrsqrt.pop %v860
    %v1103 = vmul.f32 %v1102, %v860
    %v1104 = vmul.f32 %v1103, %v1102
    %v1105 = vmul.f32 0.5, %v1104
    %v1106 = vsub.f32 1.5, %v1105
    %v1107 = vmul.f32 %v1102, %v1106
    %vm1108 = vweird.f32 %v860
    %vm1109 = vweird.f32 %v1102
    %vm1110 = vmor %vm1108, %vm1109
    %v1111 = vsel %vm1110, %v1102, %v1107
    %1113 = vset.pattern.permute.xlu0 0
    %1114 = vperm.xlu0 %1113, %v871
    %v1115 = vpop.permute.xlu0 %1114
    %1118 = vset.pattern.permute.xlu0 0
    %1119 = vperm.xlu0 %1118, %v881
    %v1120 = vpop.permute.xlu0 %1119
    %1123 = vset.pattern.permute.xlu0 0
    %1124 = vperm.xlu0 %1123, %v891
    %v1125 = vpop.permute.xlu0 %1124
    %1128 = vset.pattern.permute.xlu0 0
    %1129 = vperm.xlu0 %1128, %v901
    %v1130 = vpop.permute.xlu0 %1129
    %1133 = vset.pattern.permute.xlu0 0
    %1134 = vperm.xlu0 %1133, %v911
    %v1135 = vpop.permute.xlu0 %1134
    %1138 = vset.pattern.permute.xlu0 0
    %1139 = vperm.xlu0 %1138, %v921
    %v1140 = vpop.permute.xlu0 %1139
    %1143 = vset.pattern.permute.xlu0 0
    %1144 = vperm.xlu0 %1143, %v931
    %v1145 = vpop.permute.xlu0 %1144
    %1148 = vset.pattern.permute.xlu0 0
    %1149 = vperm.xlu0 %1148, %v941
    %v1150 = vpop.permute.xlu0 %1149
    %1153 = vset.pattern.permute.xlu0 0
    %1154 = vperm.xlu0 %1153, %v951
    %v1155 = vpop.permute.xlu0 %1154
    %1158 = vset.pattern.permute.xlu0 0
    %1159 = vperm.xlu0 %1158, %v961
    %v1160 = vpop.permute.xlu0 %1159
    %1163 = vset.pattern.permute.xlu0 0
    %1164 = vperm.xlu0 %1163, %v971
    %v1165 = vpop.permute.xlu0 %1164
    %1168 = vset.pattern.permute.xlu0 0
    %1169 = vperm.xlu0 %1168, %v981
    %v1170 = vpop.permute.xlu0 %1169
    %1173 = vset.pattern.permute.xlu0 0
    %1174 = vperm.xlu0 %1173, %v991
    %v1175 = vpop.permute.xlu0 %1174
    %1178 = vset.pattern.permute.xlu0 0
    %1179 = vperm.xlu0 %1178, %v1001
    %v1180 = vpop.permute.xlu0 %1179
    %1183 = vset.pattern.permute.xlu0 0
    %1184 = vperm.xlu0 %1183, %v1011
    %v1185 = vpop.permute.xlu0 %1184
    %1188 = vset.pattern.permute.xlu0 0
    %1189 = vperm.xlu0 %1188, %v1021
    %v1190 = vpop.permute.xlu0 %1189
    %1193 = vset.pattern.permute.xlu0 0
    %1194 = vperm.xlu0 %1193, %v1031
    %v1195 = vpop.permute.xlu0 %1194
    %1198 = vset.pattern.permute.xlu0 0
    %1199 = vperm.xlu0 %1198, %v1041
    %v1200 = vpop.permute.xlu0 %1199
    %1203 = vset.pattern.permute.xlu0 0
    %1204 = vperm.xlu0 %1203, %v1051
    %v1205 = vpop.permute.xlu0 %1204
    %1208 = vset.pattern.permute.xlu0 0
    %1209 = vperm.xlu0 %1208, %v1061
    %v1210 = vpop.permute.xlu0 %1209
    %1213 = vset.pattern.permute.xlu0 0
    %1214 = vperm.xlu0 %1213, %v1071
    %v1215 = vpop.permute.xlu0 %1214
    %1218 = vset.pattern.permute.xlu0 0
    %1219 = vperm.xlu0 %1218, %v1081
    %v1220 = vpop.permute.xlu0 %1219
    %1223 = vset.pattern.permute.xlu0 0
    %1224 = vperm.xlu0 %1223, %v1091
    %v1225 = vpop.permute.xlu0 %1224
    %1228 = vset.pattern.permute.xlu0 0
    %1229 = vperm.xlu0 %1228, %v1101
    %v1230 = vpop.permute.xlu0 %1229
    %1233 = vset.pattern.permute.xlu0 0
    %1234 = vperm.xlu0 %1233, %v1111
    %v1235 = vpop.permute.xlu0 %1234
    %v1237 = vmul.f32 %v1115, %v319
    %v1238 = vmul.f32 %v1115, %v320
    %v1239 = vmul.f32 %v1120, %v321
    %v1240 = vmul.f32 %v1120, %v322
    %v1241 = vmul.f32 %v1125, %v323
    %v1242 = vmul.f32 %v1125, %v324
    %v1243 = vmul.f32 %v1130, %v325
    %v1244 = vmul.f32 %v1130, %v326
    %v1245 = vmul.f32 %v1135, %v327
    %v1246 = vmul.f32 %v1135, %v328
    %v1247 = vmul.f32 %v1140, %v329
    %v1248 = vmul.f32 %v1140, %v330
    %v1249 = vmul.f32 %v1145, %v331
    %v1250 = vmul.f32 %v1145, %v332
    %v1251 = vmul.f32 %v1150, %v333
    %v1252 = vmul.f32 %v1150, %v334
    %v1253 = vmul.f32 %v1155, %v335
    %v1254 = vmul.f32 %v1155, %v336
    %v1255 = vmul.f32 %v1160, %v337
    %v1256 = vmul.f32 %v1160, %v338
    %v1257 = vmul.f32 %v1165, %v339
    %v1258 = vmul.f32 %v1165, %v340
    %v1259 = vmul.f32 %v1170, %v341
    %v1260 = vmul.f32 %v1170, %v342
    %v1261 = vmul.f32 %v1175, %v343
    %v1262 = vmul.f32 %v1175, %v344
    %v1263 = vmul.f32 %v1180, %v345
    %v1264 = vmul.f32 %v1180, %v346
    %v1265 = vmul.f32 %v1185, %v347
    %v1266 = vmul.f32 %v1185, %v348
    %v1267 = vmul.f32 %v1190, %v349
    %v1268 = vmul.f32 %v1190, %v350
    %v1269 = vmul.f32 %v1195, %v351
    %v1270 = vmul.f32 %v1195, %v352
    %v1271 = vmul.f32 %v1200, %v353
    %v1272 = vmul.f32 %v1200, %v354
    %v1273 = vmul.f32 %v1205, %v355
    %v1274 = vmul.f32 %v1205, %v356
    %v1275 = vmul.f32 %v1210, %v357
    %v1276 = vmul.f32 %v1210, %v358
    %v1277 = vmul.f32 %v1215, %v359
    %v1278 = vmul.f32 %v1215, %v360
    %v1279 = vmul.f32 %v1220, %v361
    %v1280 = vmul.f32 %v1220, %v362
    %v1281 = vmul.f32 %v1225, %v363
    %v1282 = vmul.f32 %v1225, %v364
    %v1283 = vmul.f32 %v1230, %v365
    %v1284 = vmul.f32 %v1230, %v366
    %v1285 = vmul.f32 %v1235, %v367
    %v1286 = vmul.f32 %v1235, %v368
    %v1287 = vmul.f32 %v1237, %v464
    %v1288 = vmul.f32 %v1238, %v474
    %v1289 = vmul.f32 %v1239, %v464
    %v1290 = vmul.f32 %v1240, %v474
    %v1291 = vmul.f32 %v1241, %v464
    %v1292 = vmul.f32 %v1242, %v474
    %v1293 = vmul.f32 %v1243, %v464
    %v1294 = vmul.f32 %v1244, %v474
    %v1295 = vmul.f32 %v1245, %v464
    %v1296 = vmul.f32 %v1246, %v474
    %v1297 = vmul.f32 %v1247, %v464
    %v1298 = vmul.f32 %v1248, %v474
    %v1299 = vmul.f32 %v1249, %v464
    %v1300 = vmul.f32 %v1250, %v474
    %v1301 = vmul.f32 %v1251, %v464
    %v1302 = vmul.f32 %v1252, %v474
    %v1303 = vmul.f32 %v1253, %v464
    %v1304 = vmul.f32 %v1254, %v474
    %v1305 = vmul.f32 %v1255, %v464
    %v1306 = vmul.f32 %v1256, %v474
    %v1307 = vmul.f32 %v1257, %v464
    %v1308 = vmul.f32 %v1258, %v474
    %v1309 = vmul.f32 %v1259, %v464
    %v1310 = vmul.f32 %v1260, %v474
    %v1311 = vmul.f32 %v1261, %v464
    %v1312 = vmul.f32 %v1262, %v474
    %v1313 = vmul.f32 %v1263, %v464
    %v1314 = vmul.f32 %v1264, %v474
    %v1315 = vmul.f32 %v1265, %v464
    %v1316 = vmul.f32 %v1266, %v474
    %v1317 = vmul.f32 %v1267, %v464
    %v1318 = vmul.f32 %v1268, %v474
    %v1319 = vmul.f32 %v1269, %v464
    %v1320 = vmul.f32 %v1270, %v474
    %v1321 = vmul.f32 %v1271, %v464
    %v1322 = vmul.f32 %v1272, %v474
    %v1323 = vmul.f32 %v1273, %v464
    %v1324 = vmul.f32 %v1274, %v474
    %v1325 = vmul.f32 %v1275, %v464
    %v1326 = vmul.f32 %v1276, %v474
    %v1327 = vmul.f32 %v1277, %v464
    %v1328 = vmul.f32 %v1278, %v474
    %v1329 = vmul.f32 %v1279, %v464
    %v1330 = vmul.f32 %v1280, %v474
    %v1331 = vmul.f32 %v1281, %v464
    %v1332 = vmul.f32 %v1282, %v474
    %v1333 = vmul.f32 %v1283, %v464
    %v1334 = vmul.f32 %v1284, %v474
    %v1335 = vmul.f32 %v1285, %v464
    %v1336 = vmul.f32 %v1286, %v474
    %v1337 = vld [vmem:[#allocation5] sm:$0xff]
    %v1338 = vld [vmem:[#allocation5 + $0x8] sm:$0xff]
    %v1339 = vld [vmem:[#allocation5 + $0x10] sm:$0xff]
    %v1340 = vld [vmem:[#allocation5 + $0x18] sm:$0xff]
    %v1341 = vld [vmem:[#allocation5 + $0x20] sm:$0xff]
    %v1342 = vld [vmem:[#allocation5 + $0x28] sm:$0xff]
    %v1343 = vld [vmem:[#allocation5 + $0x30] sm:$0xff]
    %v1344 = vld [vmem:[#allocation5 + $0x38] sm:$0xff]
    %v1345 = vld [vmem:[#allocation5 + $0x40] sm:$0xff]
    %v1346 = vld [vmem:[#allocation5 + $0x48] sm:$0xff]
    %v1347 = vld [vmem:[#allocation5 + $0x50] sm:$0xff]
    %v1348 = vld [vmem:[#allocation5 + $0x58] sm:$0xff]
    %v1349 = vld [vmem:[#allocation5 + $0x60] sm:$0xff]
    %v1350 = vld [vmem:[#allocation5 + $0x68] sm:$0xff]
    %v1351 = vld [vmem:[#allocation5 + $0x70] sm:$0xff]
    %v1352 = vld [vmem:[#allocation5 + $0x78] sm:$0xff]
    %v1353 = vld [vmem:[#allocation5 + $0x80] sm:$0xff]
    %v1354 = vld [vmem:[#allocation5 + $0x88] sm:$0xff]
    %v1355 = vld [vmem:[#allocation5 + $0x90] sm:$0xff]
    %v1356 = vld [vmem:[#allocation5 + $0x98] sm:$0xff]
    %v1357 = vld [vmem:[#allocation5 + $0xa0] sm:$0xff]
    %v1358 = vld [vmem:[#allocation5 + $0xa8] sm:$0xff]
    %v1359 = vld [vmem:[#allocation5 + $0xb0] sm:$0xff]
    %v1360 = vld [vmem:[#allocation5 + $0xb8] sm:$0xff]
    %v1361 = vld [vmem:[#allocation5 + $0xc0] sm:$0xff]
    %v1362 = vld [vmem:[%s2] sm:$0x1]
    %v1364 = vperm.slane %v1362, 0
    %v1367 = vsel %vm399, %v1288, 0
    %v1370 = vsel %vm399, %v1290, 0
    %v1373 = vsel %vm399, %v1292, 0
    %v1376 = vsel %vm399, %v1294, 0
    %v1379 = vsel %vm399, %v1296, 0
    %v1382 = vsel %vm399, %v1298, 0
    %v1385 = vsel %vm399, %v1300, 0
    %v1388 = vsel %vm399, %v1302, 0
    %v1391 = vsel %vm399, %v1304, 0
    %v1394 = vsel %vm399, %v1306, 0
    %v1397 = vsel %vm399, %v1308, 0
    %v1400 = vsel %vm399, %v1310, 0
    %v1403 = vsel %vm399, %v1312, 0
    %v1406 = vsel %vm399, %v1314, 0
    %v1409 = vsel %vm399, %v1316, 0
    %v1412 = vsel %vm399, %v1318, 0
    %v1415 = vsel %vm399, %v1320, 0
    %v1418 = vsel %vm399, %v1322, 0
    %v1421 = vsel %vm399, %v1324, 0
    %v1424 = vsel %vm399, %v1326, 0
    %v1427 = vsel %vm399, %v1328, 0
    %v1430 = vsel %vm399, %v1330, 0
    %v1433 = vsel %vm399, %v1332, 0
    %v1436 = vsel %vm399, %v1334, 0
    %v1439 = vsel %vm399, %v1336, 0
    %1441 = vmatpush.msra.mxu0 %v1352
    %1442 = vmatpush.msra.mxu0 %v1351
    %1443 = vmatpush.msra.mxu0 %v1350
    %1444 = vmatpush.msra.mxu0 %v1349
    %1445 = vmatpush.msra.mxu0 %v1348
    %1446 = vmatpush.msra.mxu0 %v1347
    %1447 = vmatpush.msra.mxu0 %v1346
    %1448 = vmatpush.msra.mxu0 %v1345
    %1449 = vmatpush.msra.mxu0 %v1344
    %1450 = vmatpush.msra.mxu0 %v1343
    %1451 = vmatpush.msra.mxu0 %v1342
    %1452 = vmatpush.msra.mxu0 %v1341
    %1453 = vmatpush.msra.mxu0 %v1340
    %1454 = vmatpush.msra.mxu0 %v1339
    %1455 = vmatpush.msra.mxu0 %v1338
    %1456 = vmatpush.msra.mxu0 %v1337
    %1457 = vmatmul.f32.gmra.mxu0 %v1287
    %v1458 = vpop.f32.mrf.mxu0
    %v1459 = vadd.f32 %v1364, %v1458
    %1460 = vmatmul.f32.gmra.mxu0 %v1289
    %v1461 = vpop.f32.mrf.mxu0
    %v1462 = vadd.f32 %v1364, %v1461
    %1463 = vmatmul.f32.gmra.mxu0 %v1291
    %v1464 = vpop.f32.mrf.mxu0
    %v1465 = vadd.f32 %v1364, %v1464
    %1466 = vmatmul.f32.gmra.mxu0 %v1293
    %v1467 = vpop.f32.mrf.mxu0
    %v1468 = vadd.f32 %v1364, %v1467
    %1469 = vmatmul.f32.gmra.mxu0 %v1295
    %v1470 = vpop.f32.mrf.mxu0
    %v1471 = vadd.f32 %v1364, %v1470
    %1472 = vmatmul.f32.gmra.mxu0 %v1297
    %v1473 = vpop.f32.mrf.mxu0
    %v1474 = vadd.f32 %v1364, %v1473
    %1475 = vmatmul.f32.gmra.mxu0 %v1299
    %v1476 = vpop.f32.mrf.mxu0
    %v1477 = vadd.f32 %v1364, %v1476
    %1478 = vmatmul.f32.gmra.mxu0 %v1301
    %v1479 = vpop.f32.mrf.mxu0
    %v1480 = vadd.f32 %v1364, %v1479
    %1481 = vmatmul.f32.gmra.mxu0 %v1303
    %v1482 = vpop.f32.mrf.mxu0
    %v1483 = vadd.f32 %v1364, %v1482
    %1484 = vmatmul.f32.gmra.mxu0 %v1305
    %v1485 = vpop.f32.mrf.mxu0
    %v1486 = vadd.f32 %v1364, %v1485
    %1487 = vmatmul.f32.gmra.mxu0 %v1307
    %v1488 = vpop.f32.mrf.mxu0
    %v1489 = vadd.f32 %v1364, %v1488
    %1490 = vmatmul.f32.gmra.mxu0 %v1309
    %v1491 = vpop.f32.mrf.mxu0
    %v1492 = vadd.f32 %v1364, %v1491
    %1493 = vmatmul.f32.gmra.mxu0 %v1311
    %v1494 = vpop.f32.mrf.mxu0
    %v1495 = vadd.f32 %v1364, %v1494
    %1496 = vmatmul.f32.gmra.mxu0 %v1313
    %v1497 = vpop.f32.mrf.mxu0
    %v1498 = vadd.f32 %v1364, %v1497
    %1499 = vmatmul.f32.gmra.mxu0 %v1315
    %v1500 = vpop.f32.mrf.mxu0
    %v1501 = vadd.f32 %v1364, %v1500
    %1502 = vmatmul.f32.gmra.mxu0 %v1317
    %v1503 = vpop.f32.mrf.mxu0
    %v1504 = vadd.f32 %v1364, %v1503
    %1505 = vmatmul.f32.gmra.mxu0 %v1319
    %v1506 = vpop.f32.mrf.mxu0
    %v1507 = vadd.f32 %v1364, %v1506
    %1508 = vmatmul.f32.gmra.mxu0 %v1321
    %v1509 = vpop.f32.mrf.mxu0
    %v1510 = vadd.f32 %v1364, %v1509
    %1511 = vmatmul.f32.gmra.mxu0 %v1323
    %v1512 = vpop.f32.mrf.mxu0
    %v1513 = vadd.f32 %v1364, %v1512
    %1514 = vmatmul.f32.gmra.mxu0 %v1325
    %v1515 = vpop.f32.mrf.mxu0
    %v1516 = vadd.f32 %v1364, %v1515
    %1517 = vmatmul.f32.gmra.mxu0 %v1327
    %v1518 = vpop.f32.mrf.mxu0
    %v1519 = vadd.f32 %v1364, %v1518
    %1520 = vmatmul.f32.gmra.mxu0 %v1329
    %v1521 = vpop.f32.mrf.mxu0
    %v1522 = vadd.f32 %v1364, %v1521
    %1523 = vmatmul.f32.gmra.mxu0 %v1331
    %v1524 = vpop.f32.mrf.mxu0
    %v1525 = vadd.f32 %v1364, %v1524
    %1526 = vmatmul.f32.gmra.mxu0 %v1333
    %v1527 = vpop.f32.mrf.mxu0
    %v1528 = vadd.f32 %v1364, %v1527
    %1529 = vmatmul.f32.gmra.mxu0 %v1335
    %v1530 = vpop.f32.mrf.mxu0
    %v1531 = vadd.f32 %v1364, %v1530
    %1532 = vdwg.mxu0
    %1533 = vmatpush.msra.mxu0 0.0
    %1534 = vmatpush.msra.mxu0 0.0
    %1535 = vmatpush.msra.mxu0 0.0
    %1536 = vmatpush.msra.mxu0 0.0
    %1537 = vmatpush.msra.mxu0 0.0
    %1538 = vmatpush.msra.mxu0 0.0
    %1539 = vmatpush.msra.mxu0 0.0
    %1540 = vmatpush.msra.mxu0 %v1361
    %1541 = vmatpush.msra.mxu0 %v1360
    %1542 = vmatpush.msra.mxu0 %v1359
    %1543 = vmatpush.msra.mxu0 %v1358
    %1544 = vmatpush.msra.mxu0 %v1357
    %1545 = vmatpush.msra.mxu0 %v1356
    %1546 = vmatpush.msra.mxu0 %v1355
    %1547 = vmatpush.msra.mxu0 %v1354
    %1548 = vmatpush.msra.mxu0 %v1353
    %1549 = vmatmul.f32.gmra.mxu0 %v1367
    %v1550 = vpop.f32.mrf.mxu0
    %v1551 = vadd.f32 %v1459, %v1550
    %1552 = vmatmul.f32.gmra.mxu0 %v1370
    %v1553 = vpop.f32.mrf.mxu0
    %v1554 = vadd.f32 %v1462, %v1553
    %1555 = vmatmul.f32.gmra.mxu0 %v1373
    %v1556 = vpop.f32.mrf.mxu0
    %v1557 = vadd.f32 %v1465, %v1556
    %1558 = vmatmul.f32.gmra.mxu0 %v1376
    %v1559 = vpop.f32.mrf.mxu0
    %v1560 = vadd.f32 %v1468, %v1559
    %1561 = vmatmul.f32.gmra.mxu0 %v1379
    %v1562 = vpop.f32.mrf.mxu0
    %v1563 = vadd.f32 %v1471, %v1562
    %1564 = vmatmul.f32.gmra.mxu0 %v1382
    %v1565 = vpop.f32.mrf.mxu0
    %v1566 = vadd.f32 %v1474, %v1565
    %1567 = vmatmul.f32.gmra.mxu0 %v1385
    %v1568 = vpop.f32.mrf.mxu0
    %v1569 = vadd.f32 %v1477, %v1568
    %1570 = vmatmul.f32.gmra.mxu0 %v1388
    %v1571 = vpop.f32.mrf.mxu0
    %v1572 = vadd.f32 %v1480, %v1571
    %1573 = vmatmul.f32.gmra.mxu0 %v1391
    %v1574 = vpop.f32.mrf.mxu0
    %v1575 = vadd.f32 %v1483, %v1574
    %1576 = vmatmul.f32.gmra.mxu0 %v1394
    %v1577 = vpop.f32.mrf.mxu0
    %v1578 = vadd.f32 %v1486, %v1577
    %1579 = vmatmul.f32.gmra.mxu0 %v1397
    %v1580 = vpop.f32.mrf.mxu0
    %v1581 = vadd.f32 %v1489, %v1580
    %1582 = vmatmul.f32.gmra.mxu0 %v1400
    %v1583 = vpop.f32.mrf.mxu0
    %v1584 = vadd.f32 %v1492, %v1583
    %1585 = vmatmul.f32.gmra.mxu0 %v1403
    %v1586 = vpop.f32.mrf.mxu0
    %v1587 = vadd.f32 %v1495, %v1586
    %1588 = vmatmul.f32.gmra.mxu0 %v1406
    %v1589 = vpop.f32.mrf.mxu0
    %v1590 = vadd.f32 %v1498, %v1589
    %1591 = vmatmul.f32.gmra.mxu0 %v1409
    %v1592 = vpop.f32.mrf.mxu0
    %v1593 = vadd.f32 %v1501, %v1592
    %1594 = vmatmul.f32.gmra.mxu0 %v1412
    %v1595 = vpop.f32.mrf.mxu0
    %v1596 = vadd.f32 %v1504, %v1595
    %1597 = vmatmul.f32.gmra.mxu0 %v1415
    %v1598 = vpop.f32.mrf.mxu0
    %v1599 = vadd.f32 %v1507, %v1598
    %1600 = vmatmul.f32.gmra.mxu0 %v1418
    %v1601 = vpop.f32.mrf.mxu0
    %v1602 = vadd.f32 %v1510, %v1601
    %1603 = vmatmul.f32.gmra.mxu0 %v1421
    %v1604 = vpop.f32.mrf.mxu0
    %v1605 = vadd.f32 %v1513, %v1604
    %1606 = vmatmul.f32.gmra.mxu0 %v1424
    %v1607 = vpop.f32.mrf.mxu0
    %v1608 = vadd.f32 %v1516, %v1607
    %1609 = vmatmul.f32.gmra.mxu0 %v1427
    %v1610 = vpop.f32.mrf.mxu0
    %v1611 = vadd.f32 %v1519, %v1610
    %1612 = vmatmul.f32.gmra.mxu0 %v1430
    %v1613 = vpop.f32.mrf.mxu0
    %v1614 = vadd.f32 %v1522, %v1613
    %1615 = vmatmul.f32.gmra.mxu0 %v1433
    %v1616 = vpop.f32.mrf.mxu0
    %v1617 = vadd.f32 %v1525, %v1616
    %1618 = vmatmul.f32.gmra.mxu0 %v1436
    %v1619 = vpop.f32.mrf.mxu0
    %v1620 = vadd.f32 %v1528, %v1619
    %1621 = vmatmul.f32.gmra.mxu0 %v1439
    %v1622 = vpop.f32.mrf.mxu0
    %v1623 = vadd.f32 %v1531, %v1622
    %1624 = vdwg.mxu0
    %v1625 = vmax.f32 %v1551, 0.0
    %v1626 = vmax.f32 %v1554, 0.0
    %v1627 = vmax.f32 %v1557, 0.0
    %v1628 = vmax.f32 %v1560, 0.0
    %v1629 = vmax.f32 %v1563, 0.0
    %v1630 = vmax.f32 %v1566, 0.0
    %v1631 = vmax.f32 %v1569, 0.0
    %v1632 = vmax.f32 %v1572, 0.0
    %v1633 = vmax.f32 %v1575, 0.0
    %v1634 = vmax.f32 %v1578, 0.0
    %v1635 = vmax.f32 %v1581, 0.0
    %v1636 = vmax.f32 %v1584, 0.0
    %v1637 = vmax.f32 %v1587, 0.0
    %v1638 = vmax.f32 %v1590, 0.0
    %v1639 = vmax.f32 %v1593, 0.0
    %v1640 = vmax.f32 %v1596, 0.0
    %v1641 = vmax.f32 %v1599, 0.0
    %v1642 = vmax.f32 %v1602, 0.0
    %v1643 = vmax.f32 %v1605, 0.0
    %v1644 = vmax.f32 %v1608, 0.0
    %v1645 = vmax.f32 %v1611, 0.0
    %v1646 = vmax.f32 %v1614, 0.0
    %v1647 = vmax.f32 %v1617, 0.0
    %v1648 = vmax.f32 %v1620, 0.0
    %v1649 = vmax.f32 %v1623, 0.0
    %v1650 = vld [vmem:[#allocation7] sm:$0xff]
    %v1651 = vld [vmem:[#allocation7 + $0x8] sm:$0xff]
    %v1652 = vld [vmem:[#allocation7 + $0x10] sm:$0xff]
    %v1653 = vld [vmem:[#allocation7 + $0x18] sm:$0xff]
    %v1654 = vld [vmem:[#allocation7 + $0x20] sm:$0xff]
    %v1655 = vld [vmem:[#allocation7 + $0x28] sm:$0xff]
    %v1656 = vld [vmem:[#allocation7 + $0x30] sm:$0xff]
    %v1657 = vld [vmem:[#allocation7 + $0x38] sm:$0xff]
    %v1658 = vld [vmem:[#allocation7 + $0x40] sm:$0xff]
    %v1659 = vld [vmem:[#allocation7 + $0x48] sm:$0xff]
    %v1660 = vld [vmem:[#allocation7 + $0x50] sm:$0xff]
    %v1661 = vld [vmem:[#allocation7 + $0x58] sm:$0xff]
    %v1662 = vld [vmem:[#allocation7 + $0x60] sm:$0xff]
    %v1663 = vld [vmem:[#allocation7 + $0x68] sm:$0xff]
    %v1664 = vld [vmem:[#allocation7 + $0x70] sm:$0xff]
    %v1665 = vld [vmem:[#allocation7 + $0x78] sm:$0xff]
    %1666 = vmatpush.msra.mxu0 %v1665
    %1667 = vmatpush.msra.mxu0 %v1664
    %1668 = vmatpush.msra.mxu0 %v1663
    %1669 = vmatpush.msra.mxu0 %v1662
    %1670 = vmatpush.msra.mxu0 %v1661
    %1671 = vmatpush.msra.mxu0 %v1660
    %1672 = vmatpush.msra.mxu0 %v1659
    %1673 = vmatpush.msra.mxu0 %v1658
    %1674 = vmatpush.msra.mxu0 %v1657
    %1675 = vmatpush.msra.mxu0 %v1656
    %1676 = vmatpush.msra.mxu0 %v1655
    %1677 = vmatpush.msra.mxu0 %v1654
    %1678 = vmatpush.msra.mxu0 %v1653
    %1679 = vmatpush.msra.mxu0 %v1652
    %1680 = vmatpush.msra.mxu0 %v1651
    %1681 = vmatpush.msra.mxu0 %v1650
    %1682 = vmatmul.f32.gmra.mxu0 %v1625
    %v1683 = vpop.f32.mrf.mxu0
    %v1684 = vadd.f32 0.0, %v1683
    %1685 = vmatmul.f32.gmra.mxu0 %v1626
    %v1686 = vpop.f32.mrf.mxu0
    %v1687 = vadd.f32 0.0, %v1686
    %1688 = vmatmul.f32.gmra.mxu0 %v1627
    %v1689 = vpop.f32.mrf.mxu0
    %v1690 = vadd.f32 0.0, %v1689
    %1691 = vmatmul.f32.gmra.mxu0 %v1628
    %v1692 = vpop.f32.mrf.mxu0
    %v1693 = vadd.f32 0.0, %v1692
    %1694 = vmatmul.f32.gmra.mxu0 %v1629
    %v1695 = vpop.f32.mrf.mxu0
    %v1696 = vadd.f32 0.0, %v1695
    %1697 = vmatmul.f32.gmra.mxu0 %v1630
    %v1698 = vpop.f32.mrf.mxu0
    %v1699 = vadd.f32 0.0, %v1698
    %1700 = vmatmul.f32.gmra.mxu0 %v1631
    %v1701 = vpop.f32.mrf.mxu0
    %v1702 = vadd.f32 0.0, %v1701
    %1703 = vmatmul.f32.gmra.mxu0 %v1632
    %v1704 = vpop.f32.mrf.mxu0
    %v1705 = vadd.f32 0.0, %v1704
    %1706 = vmatmul.f32.gmra.mxu0 %v1633
    %v1707 = vpop.f32.mrf.mxu0
    %v1708 = vadd.f32 0.0, %v1707
    %1709 = vmatmul.f32.gmra.mxu0 %v1634
    %v1710 = vpop.f32.mrf.mxu0
    %v1711 = vadd.f32 0.0, %v1710
    %1712 = vmatmul.f32.gmra.mxu0 %v1635
    %v1713 = vpop.f32.mrf.mxu0
    %v1714 = vadd.f32 0.0, %v1713
    %1715 = vmatmul.f32.gmra.mxu0 %v1636
    %v1716 = vpop.f32.mrf.mxu0
    %v1717 = vadd.f32 0.0, %v1716
    %1718 = vmatmul.f32.gmra.mxu0 %v1637
    %v1719 = vpop.f32.mrf.mxu0
    %v1720 = vadd.f32 0.0, %v1719
    %1721 = vmatmul.f32.gmra.mxu0 %v1638
    %v1722 = vpop.f32.mrf.mxu0
    %v1723 = vadd.f32 0.0, %v1722
    %1724 = vmatmul.f32.gmra.mxu0 %v1639
    %v1725 = vpop.f32.mrf.mxu0
    %v1726 = vadd.f32 0.0, %v1725
    %1727 = vmatmul.f32.gmra.mxu0 %v1640
    %v1728 = vpop.f32.mrf.mxu0
    %v1729 = vadd.f32 0.0, %v1728
    %1730 = vmatmul.f32.gmra.mxu0 %v1641
    %v1731 = vpop.f32.mrf.mxu0
    %v1732 = vadd.f32 0.0, %v1731
    %1733 = vmatmul.f32.gmra.mxu0 %v1642
    %v1734 = vpop.f32.mrf.mxu0
    %v1735 = vadd.f32 0.0, %v1734
    %1736 = vmatmul.f32.gmra.mxu0 %v1643
    %v1737 = vpop.f32.mrf.mxu0
    %v1738 = vadd.f32 0.0, %v1737
    %1739 = vmatmul.f32.gmra.mxu0 %v1644
    %v1740 = vpop.f32.mrf.mxu0
    %v1741 = vadd.f32 0.0, %v1740
    %1742 = vmatmul.f32.gmra.mxu0 %v1645
    %v1743 = vpop.f32.mrf.mxu0
    %v1744 = vadd.f32 0.0, %v1743
    %1745 = vmatmul.f32.gmra.mxu0 %v1646
    %v1746 = vpop.f32.mrf.mxu0
    %v1747 = vadd.f32 0.0, %v1746
    %1748 = vmatmul.f32.gmra.mxu0 %v1647
    %v1749 = vpop.f32.mrf.mxu0
    %v1750 = vadd.f32 0.0, %v1749
    %1751 = vmatmul.f32.gmra.mxu0 %v1648
    %v1752 = vpop.f32.mrf.mxu0
    %v1753 = vadd.f32 0.0, %v1752
    %1754 = vmatmul.f32.gmra.mxu0 %v1649
    %v1755 = vpop.f32.mrf.mxu0
    %v1756 = vadd.f32 0.0, %v1755
    %1757 = vdwg.mxu0
    %v1758 = vld [vmem:[%s4] sm:$0x1]
    %v1760 = vperm.slane %v1758, 0
    %1762 = vmatpush.msra.mxu0 %v1729
    %1763 = vmatpush.msra.mxu0 %v1726
    %1764 = vmatpush.msra.mxu0 %v1723
    %1765 = vmatpush.msra.mxu0 %v1720
    %1766 = vmatpush.msra.mxu0 %v1717
    %1767 = vmatpush.msra.mxu0 %v1714
    %1768 = vmatpush.msra.mxu0 %v1711
    %1769 = vmatpush.msra.mxu0 %v1708
    %1770 = vmatpush.msra.mxu0 %v1705
    %1771 = vmatpush.msra.mxu0 %v1702
    %1772 = vmatpush.msra.mxu0 %v1699
    %1773 = vmatpush.msra.mxu0 %v1696
    %1774 = vmatpush.msra.mxu0 %v1693
    %1775 = vmatpush.msra.mxu0 %v1690
    %1776 = vmatpush.msra.mxu0 %v1687
    %1777 = vmatpush.msra.mxu0 %v1684
    %1778 = vmatmul.f32.gmra.mxu0 %v1287
    %v1779 = vpop.f32.mrf.mxu0
    %v1780 = vadd.f32 %v1760, %v1779
    %1781 = vmatmul.f32.gmra.mxu0 %v1289
    %v1782 = vpop.f32.mrf.mxu0
    %v1783 = vadd.f32 %v1760, %v1782
    %1784 = vmatmul.f32.gmra.mxu0 %v1291
    %v1785 = vpop.f32.mrf.mxu0
    %v1786 = vadd.f32 %v1760, %v1785
    %1787 = vmatmul.f32.gmra.mxu0 %v1293
    %v1788 = vpop.f32.mrf.mxu0
    %v1789 = vadd.f32 %v1760, %v1788
    %1790 = vmatmul.f32.gmra.mxu0 %v1295
    %v1791 = vpop.f32.mrf.mxu0
    %v1792 = vadd.f32 %v1760, %v1791
    %1793 = vmatmul.f32.gmra.mxu0 %v1297
    %v1794 = vpop.f32.mrf.mxu0
    %v1795 = vadd.f32 %v1760, %v1794
    %1796 = vmatmul.f32.gmra.mxu0 %v1299
    %v1797 = vpop.f32.mrf.mxu0
    %v1798 = vadd.f32 %v1760, %v1797
    %1799 = vmatmul.f32.gmra.mxu0 %v1301
    %v1800 = vpop.f32.mrf.mxu0
    %v1801 = vadd.f32 %v1760, %v1800
    %1802 = vmatmul.f32.gmra.mxu0 %v1303
    %v1803 = vpop.f32.mrf.mxu0
    %v1804 = vadd.f32 %v1760, %v1803
    %1805 = vmatmul.f32.gmra.mxu0 %v1305
    %v1806 = vpop.f32.mrf.mxu0
    %v1807 = vadd.f32 %v1760, %v1806
    %1808 = vmatmul.f32.gmra.mxu0 %v1307
    %v1809 = vpop.f32.mrf.mxu0
    %v1810 = vadd.f32 %v1760, %v1809
    %1811 = vmatmul.f32.gmra.mxu0 %v1309
    %v1812 = vpop.f32.mrf.mxu0
    %v1813 = vadd.f32 %v1760, %v1812
    %1814 = vmatmul.f32.gmra.mxu0 %v1311
    %v1815 = vpop.f32.mrf.mxu0
    %v1816 = vadd.f32 %v1760, %v1815
    %1817 = vmatmul.f32.gmra.mxu0 %v1313
    %v1818 = vpop.f32.mrf.mxu0
    %v1819 = vadd.f32 %v1760, %v1818
    %1820 = vmatmul.f32.gmra.mxu0 %v1315
    %v1821 = vpop.f32.mrf.mxu0
    %v1822 = vadd.f32 %v1760, %v1821
    %1823 = vmatmul.f32.gmra.mxu0 %v1317
    %v1824 = vpop.f32.mrf.mxu0
    %v1825 = vadd.f32 %v1760, %v1824
    %1826 = vmatmul.f32.gmra.mxu0 %v1319
    %v1827 = vpop.f32.mrf.mxu0
    %v1828 = vadd.f32 %v1760, %v1827
    %1829 = vmatmul.f32.gmra.mxu0 %v1321
    %v1830 = vpop.f32.mrf.mxu0
    %v1831 = vadd.f32 %v1760, %v1830
    %1832 = vmatmul.f32.gmra.mxu0 %v1323
    %v1833 = vpop.f32.mrf.mxu0
    %v1834 = vadd.f32 %v1760, %v1833
    %1835 = vmatmul.f32.gmra.mxu0 %v1325
    %v1836 = vpop.f32.mrf.mxu0
    %v1837 = vadd.f32 %v1760, %v1836
    %1838 = vmatmul.f32.gmra.mxu0 %v1327
    %v1839 = vpop.f32.mrf.mxu0
    %v1840 = vadd.f32 %v1760, %v1839
    %1841 = vmatmul.f32.gmra.mxu0 %v1329
    %v1842 = vpop.f32.mrf.mxu0
    %v1843 = vadd.f32 %v1760, %v1842
    %1844 = vmatmul.f32.gmra.mxu0 %v1331
    %v1845 = vpop.f32.mrf.mxu0
    %v1846 = vadd.f32 %v1760, %v1845
    %1847 = vmatmul.f32.gmra.mxu0 %v1333
    %v1848 = vpop.f32.mrf.mxu0
    %v1849 = vadd.f32 %v1760, %v1848
    %1850 = vmatmul.f32.gmra.mxu0 %v1335
    %v1851 = vpop.f32.mrf.mxu0
    %v1852 = vadd.f32 %v1760, %v1851
    %1853 = vdwg.mxu0
    %1854 = vmatpush.msra.mxu0 0.0
    %1855 = vmatpush.msra.mxu0 0.0
    %1856 = vmatpush.msra.mxu0 0.0
    %1857 = vmatpush.msra.mxu0 0.0
    %1858 = vmatpush.msra.mxu0 0.0
    %1859 = vmatpush.msra.mxu0 0.0
    %1860 = vmatpush.msra.mxu0 0.0
    %1861 = vmatpush.msra.mxu0 %v1756
    %1862 = vmatpush.msra.mxu0 %v1753
    %1863 = vmatpush.msra.mxu0 %v1750
    %1864 = vmatpush.msra.mxu0 %v1747
    %1865 = vmatpush.msra.mxu0 %v1744
    %1866 = vmatpush.msra.mxu0 %v1741
    %1867 = vmatpush.msra.mxu0 %v1738
    %1868 = vmatpush.msra.mxu0 %v1735
    %1869 = vmatpush.msra.mxu0 %v1732
    %1870 = vmatmul.f32.gmra.mxu0 %v1367
    %v1871 = vpop.f32.mrf.mxu0
    %v1872 = vadd.f32 %v1780, %v1871
    %1873 = vmatmul.f32.gmra.mxu0 %v1370
    %v1874 = vpop.f32.mrf.mxu0
    %v1875 = vadd.f32 %v1783, %v1874
    %1876 = vmatmul.f32.gmra.mxu0 %v1373
    %v1877 = vpop.f32.mrf.mxu0
    %v1878 = vadd.f32 %v1786, %v1877
    %1879 = vmatmul.f32.gmra.mxu0 %v1376
    %v1880 = vpop.f32.mrf.mxu0
    %v1881 = vadd.f32 %v1789, %v1880
    %1882 = vmatmul.f32.gmra.mxu0 %v1379
    %v1883 = vpop.f32.mrf.mxu0
    %v1884 = vadd.f32 %v1792, %v1883
    %1885 = vmatmul.f32.gmra.mxu0 %v1382
    %v1886 = vpop.f32.mrf.mxu0
    %v1887 = vadd.f32 %v1795, %v1886
    %1888 = vmatmul.f32.gmra.mxu0 %v1385
    %v1889 = vpop.f32.mrf.mxu0
    %v1890 = vadd.f32 %v1798, %v1889
    %1891 = vmatmul.f32.gmra.mxu0 %v1388
    %v1892 = vpop.f32.mrf.mxu0
    %v1893 = vadd.f32 %v1801, %v1892
    %1894 = vmatmul.f32.gmra.mxu0 %v1391
    %v1895 = vpop.f32.mrf.mxu0
    %v1896 = vadd.f32 %v1804, %v1895
    %1897 = vmatmul.f32.gmra.mxu0 %v1394
    %v1898 = vpop.f32.mrf.mxu0
    %v1899 = vadd.f32 %v1807, %v1898
    %1900 = vmatmul.f32.gmra.mxu0 %v1397
    %v1901 = vpop.f32.mrf.mxu0
    %v1902 = vadd.f32 %v1810, %v1901
    %1903 = vmatmul.f32.gmra.mxu0 %v1400
    %v1904 = vpop.f32.mrf.mxu0
    %v1905 = vadd.f32 %v1813, %v1904
    %1906 = vmatmul.f32.gmra.mxu0 %v1403
    %v1907 = vpop.f32.mrf.mxu0
    %v1908 = vadd.f32 %v1816, %v1907
    %1909 = vmatmul.f32.gmra.mxu0 %v1406
    %v1910 = vpop.f32.mrf.mxu0
    %v1911 = vadd.f32 %v1819, %v1910
    %1912 = vmatmul.f32.gmra.mxu0 %v1409
    %v1913 = vpop.f32.mrf.mxu0
    %v1914 = vadd.f32 %v1822, %v1913
    %1915 = vmatmul.f32.gmra.mxu0 %v1412
    %v1916 = vpop.f32.mrf.mxu0
    %v1917 = vadd.f32 %v1825, %v1916
    %1918 = vmatmul.f32.gmra.mxu0 %v1415
    %v1919 = vpop.f32.mrf.mxu0
    %v1920 = vadd.f32 %v1828, %v1919
    %1921 = vmatmul.f32.gmra.mxu0 %v1418
    %v1922 = vpop.f32.mrf.mxu0
    %v1923 = vadd.f32 %v1831, %v1922
    %1924 = vmatmul.f32.gmra.mxu0 %v1421
    %v1925 = vpop.f32.mrf.mxu0
    %v1926 = vadd.f32 %v1834, %v1925
    %1927 = vmatmul.f32.gmra.mxu0 %v1424
    %v1928 = vpop.f32.mrf.mxu0
    %v1929 = vadd.f32 %v1837, %v1928
    %1930 = vmatmul.f32.gmra.mxu0 %v1427
    %v1931 = vpop.f32.mrf.mxu0
    %v1932 = vadd.f32 %v1840, %v1931
    %1933 = vmatmul.f32.gmra.mxu0 %v1430
    %v1934 = vpop.f32.mrf.mxu0
    %v1935 = vadd.f32 %v1843, %v1934
    %1936 = vmatmul.f32.gmra.mxu0 %v1433
    %v1937 = vpop.f32.mrf.mxu0
    %v1938 = vadd.f32 %v1846, %v1937
    %1939 = vmatmul.f32.gmra.mxu0 %v1436
    %v1940 = vpop.f32.mrf.mxu0
    %v1941 = vadd.f32 %v1849, %v1940
    %1942 = vmatmul.f32.gmra.mxu0 %v1439
    %v1943 = vpop.f32.mrf.mxu0
    %v1944 = vadd.f32 %v1852, %v1943
    %1945 = vdwg.mxu0
    %v1946 = vmax.f32 %v1872, 0.0
    %v1947 = vmax.f32 %v1875, 0.0
    %v1948 = vmax.f32 %v1878, 0.0
    %v1949 = vmax.f32 %v1881, 0.0
    %v1950 = vmax.f32 %v1884, 0.0
    %v1951 = vmax.f32 %v1887, 0.0
    %v1952 = vmax.f32 %v1890, 0.0
    %v1953 = vmax.f32 %v1893, 0.0
    %v1954 = vmax.f32 %v1896, 0.0
    %v1955 = vmax.f32 %v1899, 0.0
    %v1956 = vmax.f32 %v1902, 0.0
    %v1957 = vmax.f32 %v1905, 0.0
    %v1958 = vmax.f32 %v1908, 0.0
    %v1959 = vmax.f32 %v1911, 0.0
    %v1960 = vmax.f32 %v1914, 0.0
    %v1961 = vmax.f32 %v1917, 0.0
    %v1962 = vmax.f32 %v1920, 0.0
    %v1963 = vmax.f32 %v1923, 0.0
    %v1964 = vmax.f32 %v1926, 0.0
    %v1965 = vmax.f32 %v1929, 0.0
    %v1966 = vmax.f32 %v1932, 0.0
    %v1967 = vmax.f32 %v1935, 0.0
    %v1968 = vmax.f32 %v1938, 0.0
    %v1969 = vmax.f32 %v1941, 0.0
    %v1970 = vmax.f32 %v1944, 0.0
    %v1971 = vld [vmem:[#allocation8] sm:$0xff]
    %v1972 = vld [vmem:[#allocation8 + $0x8] sm:$0xff]
    %v1973 = vld [vmem:[#allocation8 + $0x10] sm:$0xff]
    %v1974 = vld [vmem:[#allocation8 + $0x18] sm:$0xff]
    %v1975 = vld [vmem:[#allocation8 + $0x20] sm:$0xff]
    %v1976 = vld [vmem:[#allocation8 + $0x28] sm:$0xff]
    %v1977 = vld [vmem:[#allocation8 + $0x30] sm:$0xff]
    %v1978 = vld [vmem:[#allocation8 + $0x38] sm:$0xff]
    %v1979 = vld [vmem:[#allocation8 + $0x40] sm:$0xff]
    %v1980 = vld [vmem:[#allocation8 + $0x48] sm:$0xff]
    %v1981 = vld [vmem:[#allocation8 + $0x50] sm:$0xff]
    %v1982 = vld [vmem:[#allocation8 + $0x58] sm:$0xff]
    %v1983 = vld [vmem:[#allocation8 + $0x60] sm:$0xff]
    %v1984 = vld [vmem:[#allocation8 + $0x68] sm:$0xff]
    %v1985 = vld [vmem:[#allocation8 + $0x70] sm:$0xff]
    %v1986 = vld [vmem:[#allocation8 + $0x78] sm:$0xff]
    %1987 = vmatpush.msra.mxu0 %v1986
    %1988 = vmatpush.msra.mxu0 %v1985
    %1989 = vmatpush.msra.mxu0 %v1984
    %1990 = vmatpush.msra.mxu0 %v1983
    %1991 = vmatpush.msra.mxu0 %v1982
    %1992 = vmatpush.msra.mxu0 %v1981
    %1993 = vmatpush.msra.mxu0 %v1980
    %1994 = vmatpush.msra.mxu0 %v1979
    %1995 = vmatpush.msra.mxu0 %v1978
    %1996 = vmatpush.msra.mxu0 %v1977
    %1997 = vmatpush.msra.mxu0 %v1976
    %1998 = vmatpush.msra.mxu0 %v1975
    %1999 = vmatpush.msra.mxu0 %v1974
    %2000 = vmatpush.msra.mxu0 %v1973
    %2001 = vmatpush.msra.mxu0 %v1972
    %2002 = vmatpush.msra.mxu0 %v1971
    %2003 = vmatmul.f32.gmra.mxu0 %v1946
    %v2004 = vpop.f32.mrf.mxu0
    %v2005 = vadd.f32 0.0, %v2004
    %2006 = vmatmul.f32.gmra.mxu0 %v1947
    %v2007 = vpop.f32.mrf.mxu0
    %v2008 = vadd.f32 0.0, %v2007
    %2009 = vmatmul.f32.gmra.mxu0 %v1948
    %v2010 = vpop.f32.mrf.mxu0
    %v2011 = vadd.f32 0.0, %v2010
    %2012 = vmatmul.f32.gmra.mxu0 %v1949
    %v2013 = vpop.f32.mrf.mxu0
    %v2014 = vadd.f32 0.0, %v2013
    %2015 = vmatmul.f32.gmra.mxu0 %v1950
    %v2016 = vpop.f32.mrf.mxu0
    %v2017 = vadd.f32 0.0, %v2016
    %2018 = vmatmul.f32.gmra.mxu0 %v1951
    %v2019 = vpop.f32.mrf.mxu0
    %v2020 = vadd.f32 0.0, %v2019
    %2021 = vmatmul.f32.gmra.mxu0 %v1952
    %v2022 = vpop.f32.mrf.mxu0
    %v2023 = vadd.f32 0.0, %v2022
    %2024 = vmatmul.f32.gmra.mxu0 %v1953
    %v2025 = vpop.f32.mrf.mxu0
    %v2026 = vadd.f32 0.0, %v2025
    %2027 = vmatmul.f32.gmra.mxu0 %v1954
    %v2028 = vpop.f32.mrf.mxu0
    %v2029 = vadd.f32 0.0, %v2028
    %2030 = vmatmul.f32.gmra.mxu0 %v1955
    %v2031 = vpop.f32.mrf.mxu0
    %v2032 = vadd.f32 0.0, %v2031
    %2033 = vmatmul.f32.gmra.mxu0 %v1956
    %v2034 = vpop.f32.mrf.mxu0
    %v2035 = vadd.f32 0.0, %v2034
    %2036 = vmatmul.f32.gmra.mxu0 %v1957
    %v2037 = vpop.f32.mrf.mxu0
    %v2038 = vadd.f32 0.0, %v2037
    %2039 = vmatmul.f32.gmra.mxu0 %v1958
    %v2040 = vpop.f32.mrf.mxu0
    %v2041 = vadd.f32 0.0, %v2040
    %2042 = vmatmul.f32.gmra.mxu0 %v1959
    %v2043 = vpop.f32.mrf.mxu0
    %v2044 = vadd.f32 0.0, %v2043
    %2045 = vmatmul.f32.gmra.mxu0 %v1960
    %v2046 = vpop.f32.mrf.mxu0
    %v2047 = vadd.f32 0.0, %v2046
    %2048 = vmatmul.f32.gmra.mxu0 %v1961
    %v2049 = vpop.f32.mrf.mxu0
    %v2050 = vadd.f32 0.0, %v2049
    %2051 = vmatmul.f32.gmra.mxu0 %v1962
    %v2052 = vpop.f32.mrf.mxu0
    %v2053 = vadd.f32 0.0, %v2052
    %2054 = vmatmul.f32.gmra.mxu0 %v1963
    %v2055 = vpop.f32.mrf.mxu0
    %v2056 = vadd.f32 0.0, %v2055
    %2057 = vmatmul.f32.gmra.mxu0 %v1964
    %v2058 = vpop.f32.mrf.mxu0
    %v2059 = vadd.f32 0.0, %v2058
    %2060 = vmatmul.f32.gmra.mxu0 %v1965
    %v2061 = vpop.f32.mrf.mxu0
    %v2062 = vadd.f32 0.0, %v2061
    %2063 = vmatmul.f32.gmra.mxu0 %v1966
    %v2064 = vpop.f32.mrf.mxu0
    %v2065 = vadd.f32 0.0, %v2064
    %2066 = vmatmul.f32.gmra.mxu0 %v1967
    %v2067 = vpop.f32.mrf.mxu0
    %v2068 = vadd.f32 0.0, %v2067
    %2069 = vmatmul.f32.gmra.mxu0 %v1968
    %v2070 = vpop.f32.mrf.mxu0
    %v2071 = vadd.f32 0.0, %v2070
    %2072 = vmatmul.f32.gmra.mxu0 %v1969
    %v2073 = vpop.f32.mrf.mxu0
    %v2074 = vadd.f32 0.0, %v2073
    %2075 = vmatmul.f32.gmra.mxu0 %v1970
    %v2076 = vpop.f32.mrf.mxu0
    %v2077 = vadd.f32 0.0, %v2076
    %2078 = vdwg.mxu0
    %v2079 = vld [vmem:[%s6] sm:$0x1]
    %v2081 = vperm.slane %v2079, 0
    %2083 = vmatpush.msra.mxu0 %v2050
    %2084 = vmatpush.msra.mxu0 %v2047
    %2085 = vmatpush.msra.mxu0 %v2044
    %2086 = vmatpush.msra.mxu0 %v2041
    %2087 = vmatpush.msra.mxu0 %v2038
    %2088 = vmatpush.msra.mxu0 %v2035
    %2089 = vmatpush.msra.mxu0 %v2032
    %2090 = vmatpush.msra.mxu0 %v2029
    %2091 = vmatpush.msra.mxu0 %v2026
    %2092 = vmatpush.msra.mxu0 %v2023
    %2093 = vmatpush.msra.mxu0 %v2020
    %2094 = vmatpush.msra.mxu0 %v2017
    %2095 = vmatpush.msra.mxu0 %v2014
    %2096 = vmatpush.msra.mxu0 %v2011
    %2097 = vmatpush.msra.mxu0 %v2008
    %2098 = vmatpush.msra.mxu0 %v2005
    %2099 = vmatmul.f32.gmra.mxu0 %v1287
    %v2100 = vpop.f32.mrf.mxu0
    %v2101 = vadd.f32 %v2081, %v2100
    %2102 = vmatmul.f32.gmra.mxu0 %v1289
    %v2103 = vpop.f32.mrf.mxu0
    %v2104 = vadd.f32 %v2081, %v2103
    %2105 = vmatmul.f32.gmra.mxu0 %v1291
    %v2106 = vpop.f32.mrf.mxu0
    %v2107 = vadd.f32 %v2081, %v2106
    %2108 = vmatmul.f32.gmra.mxu0 %v1293
    %v2109 = vpop.f32.mrf.mxu0
    %v2110 = vadd.f32 %v2081, %v2109
    %2111 = vmatmul.f32.gmra.mxu0 %v1295
    %v2112 = vpop.f32.mrf.mxu0
    %v2113 = vadd.f32 %v2081, %v2112
    %2114 = vmatmul.f32.gmra.mxu0 %v1297
    %v2115 = vpop.f32.mrf.mxu0
    %v2116 = vadd.f32 %v2081, %v2115
    %2117 = vmatmul.f32.gmra.mxu0 %v1299
    %v2118 = vpop.f32.mrf.mxu0
    %v2119 = vadd.f32 %v2081, %v2118
    %2120 = vmatmul.f32.gmra.mxu0 %v1301
    %v2121 = vpop.f32.mrf.mxu0
    %v2122 = vadd.f32 %v2081, %v2121
    %2123 = vmatmul.f32.gmra.mxu0 %v1303
    %v2124 = vpop.f32.mrf.mxu0
    %v2125 = vadd.f32 %v2081, %v2124
    %2126 = vmatmul.f32.gmra.mxu0 %v1305
    %v2127 = vpop.f32.mrf.mxu0
    %v2128 = vadd.f32 %v2081, %v2127
    %2129 = vmatmul.f32.gmra.mxu0 %v1307
    %v2130 = vpop.f32.mrf.mxu0
    %v2131 = vadd.f32 %v2081, %v2130
    %2132 = vmatmul.f32.gmra.mxu0 %v1309
    %v2133 = vpop.f32.mrf.mxu0
    %v2134 = vadd.f32 %v2081, %v2133
    %2135 = vmatmul.f32.gmra.mxu0 %v1311
    %v2136 = vpop.f32.mrf.mxu0
    %v2137 = vadd.f32 %v2081, %v2136
    %2138 = vmatmul.f32.gmra.mxu0 %v1313
    %v2139 = vpop.f32.mrf.mxu0
    %v2140 = vadd.f32 %v2081, %v2139
    %2141 = vmatmul.f32.gmra.mxu0 %v1315
    %v2142 = vpop.f32.mrf.mxu0
    %v2143 = vadd.f32 %v2081, %v2142
    %2144 = vmatmul.f32.gmra.mxu0 %v1317
    %v2145 = vpop.f32.mrf.mxu0
    %v2146 = vadd.f32 %v2081, %v2145
    %2147 = vmatmul.f32.gmra.mxu0 %v1319
    %v2148 = vpop.f32.mrf.mxu0
    %v2149 = vadd.f32 %v2081, %v2148
    %2150 = vmatmul.f32.gmra.mxu0 %v1321
    %v2151 = vpop.f32.mrf.mxu0
    %v2152 = vadd.f32 %v2081, %v2151
    %2153 = vmatmul.f32.gmra.mxu0 %v1323
    %v2154 = vpop.f32.mrf.mxu0
    %v2155 = vadd.f32 %v2081, %v2154
    %2156 = vmatmul.f32.gmra.mxu0 %v1325
    %v2157 = vpop.f32.mrf.mxu0
    %v2158 = vadd.f32 %v2081, %v2157
    %2159 = vmatmul.f32.gmra.mxu0 %v1327
    %v2160 = vpop.f32.mrf.mxu0
    %v2161 = vadd.f32 %v2081, %v2160
    %2162 = vmatmul.f32.gmra.mxu0 %v1329
    %v2163 = vpop.f32.mrf.mxu0
    %v2164 = vadd.f32 %v2081, %v2163
    %2165 = vmatmul.f32.gmra.mxu0 %v1331
    %v2166 = vpop.f32.mrf.mxu0
    %v2167 = vadd.f32 %v2081, %v2166
    %2168 = vmatmul.f32.gmra.mxu0 %v1333
    %v2169 = vpop.f32.mrf.mxu0
    %v2170 = vadd.f32 %v2081, %v2169
    %2171 = vmatmul.f32.gmra.mxu0 %v1335
    %v2172 = vpop.f32.mrf.mxu0
    %v2173 = vadd.f32 %v2081, %v2172
    %2174 = vdwg.mxu0
    %2175 = vmatpush.msra.mxu0 0.0
    %2176 = vmatpush.msra.mxu0 0.0
    %2177 = vmatpush.msra.mxu0 0.0
    %2178 = vmatpush.msra.mxu0 0.0
    %2179 = vmatpush.msra.mxu0 0.0
    %2180 = vmatpush.msra.mxu0 0.0
    %2181 = vmatpush.msra.mxu0 0.0
    %2182 = vmatpush.msra.mxu0 %v2077
    %2183 = vmatpush.msra.mxu0 %v2074
    %2184 = vmatpush.msra.mxu0 %v2071
    %2185 = vmatpush.msra.mxu0 %v2068
    %2186 = vmatpush.msra.mxu0 %v2065
    %2187 = vmatpush.msra.mxu0 %v2062
    %2188 = vmatpush.msra.mxu0 %v2059
    %2189 = vmatpush.msra.mxu0 %v2056
    %2190 = vmatpush.msra.mxu0 %v2053
    %2191 = vmatmul.f32.gmra.mxu0 %v1367
    %v2192 = vpop.f32.mrf.mxu0
    %v2193 = vadd.f32 %v2101, %v2192
    %2194 = vmatmul.f32.gmra.mxu0 %v1370
    %v2195 = vpop.f32.mrf.mxu0
    %v2196 = vadd.f32 %v2104, %v2195
    %2197 = vmatmul.f32.gmra.mxu0 %v1373
    %v2198 = vpop.f32.mrf.mxu0
    %v2199 = vadd.f32 %v2107, %v2198
    %2200 = vmatmul.f32.gmra.mxu0 %v1376
    %v2201 = vpop.f32.mrf.mxu0
    %v2202 = vadd.f32 %v2110, %v2201
    %2203 = vmatmul.f32.gmra.mxu0 %v1379
    %v2204 = vpop.f32.mrf.mxu0
    %v2205 = vadd.f32 %v2113, %v2204
    %2206 = vmatmul.f32.gmra.mxu0 %v1382
    %v2207 = vpop.f32.mrf.mxu0
    %v2208 = vadd.f32 %v2116, %v2207
    %2209 = vmatmul.f32.gmra.mxu0 %v1385
    %v2210 = vpop.f32.mrf.mxu0
    %v2211 = vadd.f32 %v2119, %v2210
    %2212 = vmatmul.f32.gmra.mxu0 %v1388
    %v2213 = vpop.f32.mrf.mxu0
    %v2214 = vadd.f32 %v2122, %v2213
    %2215 = vmatmul.f32.gmra.mxu0 %v1391
    %v2216 = vpop.f32.mrf.mxu0
    %v2217 = vadd.f32 %v2125, %v2216
    %2218 = vmatmul.f32.gmra.mxu0 %v1394
    %v2219 = vpop.f32.mrf.mxu0
    %v2220 = vadd.f32 %v2128, %v2219
    %2221 = vmatmul.f32.gmra.mxu0 %v1397
    %v2222 = vpop.f32.mrf.mxu0
    %v2223 = vadd.f32 %v2131, %v2222
    %2224 = vmatmul.f32.gmra.mxu0 %v1400
    %v2225 = vpop.f32.mrf.mxu0
    %v2226 = vadd.f32 %v2134, %v2225
    %2227 = vmatmul.f32.gmra.mxu0 %v1403
    %v2228 = vpop.f32.mrf.mxu0
    %v2229 = vadd.f32 %v2137, %v2228
    %2230 = vmatmul.f32.gmra.mxu0 %v1406
    %v2231 = vpop.f32.mrf.mxu0
    %v2232 = vadd.f32 %v2140, %v2231
    %2233 = vmatmul.f32.gmra.mxu0 %v1409
    %v2234 = vpop.f32.mrf.mxu0
    %v2235 = vadd.f32 %v2143, %v2234
    %2236 = vmatmul.f32.gmra.mxu0 %v1412
    %v2237 = vpop.f32.mrf.mxu0
    %v2238 = vadd.f32 %v2146, %v2237
    %2239 = vmatmul.f32.gmra.mxu0 %v1415
    %v2240 = vpop.f32.mrf.mxu0
    %v2241 = vadd.f32 %v2149, %v2240
    %2242 = vmatmul.f32.gmra.mxu0 %v1418
    %v2243 = vpop.f32.mrf.mxu0
    %v2244 = vadd.f32 %v2152, %v2243
    %2245 = vmatmul.f32.gmra.mxu0 %v1421
    %v2246 = vpop.f32.mrf.mxu0
    %v2247 = vadd.f32 %v2155, %v2246
    %2248 = vmatmul.f32.gmra.mxu0 %v1424
    %v2249 = vpop.f32.mrf.mxu0
    %v2250 = vadd.f32 %v2158, %v2249
    %2251 = vmatmul.f32.gmra.mxu0 %v1427
    %v2252 = vpop.f32.mrf.mxu0
    %v2253 = vadd.f32 %v2161, %v2252
    %2254 = vmatmul.f32.gmra.mxu0 %v1430
    %v2255 = vpop.f32.mrf.mxu0
    %v2256 = vadd.f32 %v2164, %v2255
    %2257 = vmatmul.f32.gmra.mxu0 %v1433
    %v2258 = vpop.f32.mrf.mxu0
    %v2259 = vadd.f32 %v2167, %v2258
    %2260 = vmatmul.f32.gmra.mxu0 %v1436
    %v2261 = vpop.f32.mrf.mxu0
    %v2262 = vadd.f32 %v2170, %v2261
    %2263 = vmatmul.f32.gmra.mxu0 %v1439
    %v2264 = vpop.f32.mrf.mxu0
    %v2265 = vadd.f32 %v2173, %v2264
    %2266 = vdwg.mxu0
    %v2267 = vmax.f32 %v2193, 0.0
    %v2268 = vmax.f32 %v2196, 0.0
    %v2269 = vmax.f32 %v2199, 0.0
    %v2270 = vmax.f32 %v2202, 0.0
    %v2271 = vmax.f32 %v2205, 0.0
    %v2272 = vmax.f32 %v2208, 0.0
    %v2273 = vmax.f32 %v2211, 0.0
    %v2274 = vmax.f32 %v2214, 0.0
    %v2275 = vmax.f32 %v2217, 0.0
    %v2276 = vmax.f32 %v2220, 0.0
    %v2277 = vmax.f32 %v2223, 0.0
    %v2278 = vmax.f32 %v2226, 0.0
    %v2279 = vmax.f32 %v2229, 0.0
    %v2280 = vmax.f32 %v2232, 0.0
    %v2281 = vmax.f32 %v2235, 0.0
    %v2282 = vmax.f32 %v2238, 0.0
    %v2283 = vmax.f32 %v2241, 0.0
    %v2284 = vmax.f32 %v2244, 0.0
    %v2285 = vmax.f32 %v2247, 0.0
    %v2286 = vmax.f32 %v2250, 0.0
    %v2287 = vmax.f32 %v2253, 0.0
    %v2288 = vmax.f32 %v2256, 0.0
    %v2289 = vmax.f32 %v2259, 0.0
    %v2290 = vmax.f32 %v2262, 0.0
    %v2291 = vmax.f32 %v2265, 0.0
    %2292 = vst [vmem:[#allocation10] sm:$0xff] %v2267
    %2293 = vst [vmem:[#allocation10 + $0x8] sm:$0xff] %v2268
    %2294 = vst [vmem:[#allocation10 + $0x10] sm:$0xff] %v2269
    %2295 = vst [vmem:[#allocation10 + $0x18] sm:$0xff] %v2270
    %2296 = vst [vmem:[#allocation10 + $0x20] sm:$0xff] %v2271
    %2297 = vst [vmem:[#allocation10 + $0x28] sm:$0xff] %v2272
    %2298 = vst [vmem:[#allocation10 + $0x30] sm:$0xff] %v2273
    %2299 = vst [vmem:[#allocation10 + $0x38] sm:$0xff] %v2274
    %2300 = vst [vmem:[#allocation10 + $0x40] sm:$0xff] %v2275
    %2301 = vst [vmem:[#allocation10 + $0x48] sm:$0xff] %v2276
    %2302 = vst [vmem:[#allocation10 + $0x50] sm:$0xff] %v2277
    %2303 = vst [vmem:[#allocation10 + $0x58] sm:$0xff] %v2278
    %2304 = vst [vmem:[#allocation10 + $0x60] sm:$0xff] %v2279
    %2305 = vst [vmem:[#allocation10 + $0x68] sm:$0xff] %v2280
    %2306 = vst [vmem:[#allocation10 + $0x70] sm:$0xff] %v2281
    %2307 = vst [vmem:[#allocation10 + $0x78] sm:$0xff] %v2282
    %2308 = vst [vmem:[#allocation10 + $0x80] sm:$0xff] %v2283
    %2309 = vst [vmem:[#allocation10 + $0x88] sm:$0xff] %v2284
    %2310 = vst [vmem:[#allocation10 + $0x90] sm:$0xff] %v2285
    %2311 = vst [vmem:[#allocation10 + $0x98] sm:$0xff] %v2286
    %2312 = vst [vmem:[#allocation10 + $0xa0] sm:$0xff] %v2287
    %2313 = vst [vmem:[#allocation10 + $0xa8] sm:$0xff] %v2288
    %2314 = vst [vmem:[#allocation10 + $0xb0] sm:$0xff] %v2289
    %2315 = vst [vmem:[#allocation10 + $0xb8] sm:$0xff] %v2290
    %2316 = vst [vmem:[#allocation10 + $0xc0] sm:$0xff] %v2291
    // Predicated region
    $region46: #{tpu_custom_call.1} parent=1 // pred_check
      _
    $region47: #{tpu_custom_call.1} parent=1 // pred_check_branch
      %2318 = sbr.rel (0) target = $region49
    $region48: #{tpu_custom_call.1} parent=1 // pred_region
      %2320 = vsyncadd [#allocation4], 0
      %s2321 = sshll.u32 [#allocation10], 4
      %s2322 = int_to_ptr.vmem [resolvable:$true] %s2321
      %s2323 = sshll.u32 %s7, 4
      %s2324 = int_to_ptr.hbm [resolvable:$true] %s2323
      %2329 = dma.vmem_to_hbm [thread:$0]  %s2322, 3200, %s2324, [#allocation4], 128, 128, 8
    $region49: #{tpu_custom_call.1} parent=1 // pred_fallthru
      _
    // Predicated region
    $region50: #{tpu_custom_call.1} parent=1 // pred_check
      _
    $region51: #{tpu_custom_call.1} parent=1 // pred_check_branch
      %2331 = sbr.rel (0) target = $region53
    $region52: #{tpu_custom_call.1} parent=1 // pred_region
      %2333 = dma.done [#allocation4], 3200
    $region53: #{tpu_custom_call.1} parent=1 // pred_fallthru
      _
    %2334 = vsyncpa [#allocation3], 1
    %2335 = vsyncpa [#allocation6], 1
    %2336 = vsyncpa [#allocation9], 1
    %2337 = vsyncpa [#allocation4], 1

</llo_original>
